<compile_context>
chip_gen: v7x
topology: tpu7x:2x2x1
jax: 0.10.0
libtpu: 0.0.40
codegen_flags: <defaults>
</compile_context>

<pallas_src>
import math
import jax
import jax.numpy as jnp
from jax.experimental import pallas as pl
from jax.experimental.pallas import tpu as pltpu

D_MODEL = 32
NHEAD = 4
DIM_FF = 64
EPS = 1e-5
VEC_W = max(2 * D_MODEL, DIM_FF)          # lane width of the packed bias/gamma slab
SLAB_ROWS = max(D_MODEL, DIM_FF)          # 64: rows padded so w2 (FF, D) fits
WCOLS = 4 * D_MODEL + DIM_FF              # [ wq*scale | wk | wv | wo | w1 ]
SLAB_COLS = WCOLS + D_MODEL               # + w2 columns -> (64, 224)


def _pack_params(params, param_dtype=jnp.float32):
    """Pack the 18 per-tensor params into 2 arrays (fewer, larger DMAs).

    Weight slab (SLAB_ROWS, SLAB_COLS):
      rows 0:D  , cols 0:WCOLS          -> [ wq*scale | wk | wv | wo | w1 ]
      rows 0:FF , cols WCOLS:WCOLS+D    -> w2
    Vector slab rows (11, VEC_W), all f32:
      0 g1, 1 be1, 2 bq*scale, 3 [bk|bv], 4 bo, 5 g2, 6 be2, 7 bl1, 8 bl2,
      9 g3, 10 be3
    """
    (g1, be1, wq, wk, wv, bq, bk, bv, wo, bo,
     g2, be2, w1, bl1, w2, bl2, g3, be3) = params
    scale = 1.0 / math.sqrt(D_MODEL // NHEAD)

    top = jnp.concatenate([wq * scale, wk, wv, wo, w1], axis=1)        # (D, WCOLS)
    top = jnp.pad(top, ((0, SLAB_ROWS - D_MODEL), (0, 0)))             # (64, WCOLS)
    w_big = jnp.concatenate([top, w2], axis=1).astype(param_dtype)     # (64, SLAB_COLS)

    def row(v):
        v = jnp.asarray(v).reshape(1, -1)
        return jnp.pad(v, ((0, 0), (0, VEC_W - v.shape[1])))

    vecs = jnp.concatenate([
        row(g1), row(be1), row(bq * scale),
        row(jnp.concatenate([bk, bv], axis=1)),
        row(bo), row(g2), row(be2), row(bl1), row(bl2), row(g3), row(be3),
    ], axis=0).astype(jnp.float32)                                      # LN/bias stay f32
    return w_big, vecs


def _tensorcores_per_chip():
    """Heuristic: v7x exposes 2 TensorCores per chip; v5e/v6e expose 1."""
    try:
        kind = jax.devices()[0].device_kind.lower()
    except Exception:  # pragma: no cover
        return 1
    return 2 if ("v7" in kind or "7x" in kind) else 1


def decoder_layer(tgt, memory, params, batch_block=None, param_dtype=jnp.float32):
    B, T, D = tgt.shape
    _, S, _ = memory.shape
    assert D == D_MODEL

    # Default batch_block: one fat step on single-TC parts (v5e/v6e); split
    # the batch into 2 blocks on 2-TC parts (v7x) so the "parallel" grid axis
    # has >= 2 steps and megacore sharding engages.
    if batch_block is None:
        if (_tensorcores_per_chip() >= 2 and B % 2 == 0
                and ((B // 2) * T) % 8 == 0 and ((B // 2) * S) % 8 == 0):
            batch_block = B // 2
        else:
            batch_block = B
    assert B % batch_block == 0
    n_blocks = B // batch_block
    MT = batch_block * T           # query rows per grid step
    MS = batch_block * S           # key/value rows per grid step
    dh = D // NHEAD
    # BlockSpec (8, .) sublane constraint unless the block spans the full array.
    assert n_blocks == 1 or (MT % 8 == 0 and MS % 8 == 0), (MT, MS)

    w_big, vecs = _pack_params(params, param_dtype)
    Bb = batch_block
    FF = DIM_FF

    def kernel(x_ref, mem_ref, wb_ref, vec_ref, out_ref):
        x = x_ref[...]                       # (MT, D)  batch folded into rows
        mem = mem_ref[...]                   # (MS, D)
        wb = wb_ref[...]                     # (SLAB_ROWS, SLAB_COLS) packed weights
        vv = vec_ref[...]                    # (11, VEC_W)  packed vectors (f32)
        wdt = wb.dtype                       # f32 (default) or bf16

        def vrow(r, width):
            return vv[r:r + 1, :width]       # (1, width) broadcast row

        def ln(z, g, b):                     # LayerNorm in f32
            mu = jnp.mean(z, axis=-1, keepdims=True)
            var = jnp.mean((z - mu) ** 2, axis=-1, keepdims=True)
            return (z - mu) * jax.lax.rsqrt(var + EPS) * g + b

        # tgt = norm1(tgt + dropout1(tgt))   (dropout == identity in eval)
        x = ln(2.0 * x, vrow(0, D), vrow(1, D))

        # ONE fused projection matmul: rows = [ln1(x); mem], cols = [wq*s|wk|wv].
        # The wasted MACs (K/V of x rows, Q of mem rows) are negligible here;
        # it replaces two tiny MXU pushes with one.
        stacked = jnp.concatenate([x, mem], axis=0).astype(wdt)          # (MT+MS, D)
        proj = jnp.dot(stacked, wb[0:D, 0:3 * D],
                       preferred_element_type=jnp.float32)               # (MT+MS, 3D)
        q = proj[0:MT, 0:D] + vrow(2, D)          # scale already folded into wq/bq
        kv = proj[MT:MT + MS, D:3 * D] + vrow(3, 2 * D)

        q3 = q.reshape(Bb, T, D)
        k3 = kv[:, 0:D].reshape(Bb, S, D)
        v3 = kv[:, D:2 * D].reshape(Bb, S, D)

        # Stack heads along the leading batch axis -> one score einsum, ONE
        # fused softmax pass, one context einsum (instead of 4x unrolled).
        def heads(z3):
            return jnp.concatenate(
                [z3[:, :, h * dh:(h + 1) * dh] for h in range(NHEAD)], axis=0)

        qh = heads(q3)                          # (NHEAD*Bb, T, dh)
        kh = heads(k3)                          # (NHEAD*Bb, S, dh)
        vh = heads(v3)                          # (NHEAD*Bb, S, dh)

        s = jnp.einsum('btd,bsd->bts', qh, kh,
                       preferred_element_type=jnp.float32)                # (H*Bb, T, S)
        s = s - jnp.max(s, axis=-1, keepdims=True)
        p = jnp.exp(s)
        p = p / jnp.sum(p, axis=-1, keepdims=True)    # exact; EUP not the binding slot
        ctx = jnp.einsum('bts,bsd->btd', p, vh,
                         preferred_element_type=jnp.float32)              # (H*Bb, T, dh)

        # Re-assemble heads on the lane axis and push through W_o in ONE matmul.
        ctx_cat = jnp.concatenate(
            [ctx[h * Bb:(h + 1) * Bb].reshape(MT, dh) for h in range(NHEAD)],
            axis=-1)                                                      # (MT, D)
        attn = jnp.dot(ctx_cat.astype(wdt), wb[0:D, 3 * D:4 * D],
                       preferred_element_type=jnp.float32) + vrow(4, D)

        # tgt = norm2(tgt + dropout2(attn))
        x = ln(x + attn, vrow(5, D), vrow(6, D))

        # FFN: linear2(relu(linear1(x)))   (w2 lives in the same weight slab)
        h1 = jnp.dot(x.astype(wdt), wb[0:D, 4 * D:4 * D + FF],
                     preferred_element_type=jnp.float32) + vrow(7, FF)
        h1 = jnp.maximum(h1, 0.0)
        h2 = jnp.dot(h1.astype(wdt), wb[0:FF, WCOLS:WCOLS + D],
                     preferred_element_type=jnp.float32) + vrow(8, D)

        # tgt = norm3(tgt + dropout3(ffn))
        out_ref[...] = ln(x + h2, vrow(9, D), vrow(10, D))

    tgt2d = tgt.reshape(B * T, D)        # fold batch into M in the wrapper
    mem2d = memory.reshape(B * S, D)

    in_specs = [
        pl.BlockSpec((MT, D), lambda i: (i, 0)),
        pl.BlockSpec((MS, D), lambda i: (i, 0)),
        pl.BlockSpec(w_big.shape, lambda i: (0, 0)),   # full-array param slabs
        pl.BlockSpec(vecs.shape, lambda i: (0, 0)),
    ]
    out_spec = pl.BlockSpec((MT, D), lambda i: (i, 0))

    out = pl.pallas_call(
        kernel,
        out_shape=jax.ShapeDtypeStruct((B * T, D), jnp.float32),
        grid_spec=pltpu.PrefetchScalarGridSpec(
            num_scalar_prefetch=0,
            grid=(n_blocks,),
            in_specs=in_specs,
            out_specs=out_spec,
        ),
        compiler_params=pltpu.CompilerParams(
            dimension_semantics=("parallel",),
            # Explicit VMEM budget; trivially sufficient at this size and a
            # reminder to re-derive batch_block per generation (v7x has half
            # the VMEM of v5e/v6e) when scaling to real ML-Decoder widths.
            vmem_limit_bytes=32 * 1024 * 1024,
        ),
    )(tgt2d, mem2d, w_big, vecs)
    return out.reshape(B, T, D)


def reference(tgt, memory, params):
    (g1, be1, wq, wk, wv, bq, bk, bv, wo, bo,
     g2, be2, w1, bl1, w2, bl2, g3, be3) = params

    def ln(x, g, b):
        m = x.mean(-1, keepdims=True)
        var = ((x - m) ** 2).mean(-1, keepdims=True)
        return (x - m) / jnp.sqrt(var + EPS) * g + b

    B, T, D = tgt.shape
    S = memory.shape[1]
    dh = D_MODEL // NHEAD

    x = tgt + tgt
    x = ln(x, g1, be1)
    q = x @ wq + bq
    k = memory @ wk + bk
    v = memory @ wv + bv
    qh = q.reshape(B, T, NHEAD, dh).transpose(0, 2, 1, 3)
    kh = k.reshape(B, S, NHEAD, dh).transpose(0, 2, 1, 3)
    vh = v.reshape(B, S, NHEAD, dh).transpose(0, 2, 1, 3)
    s = jnp.einsum('bhtd,bhsd->bhts', qh, kh) / math.sqrt(dh)
    p = jax.nn.softmax(s, axis=-1)
    o = jnp.einsum('bhts,bhsd->bhtd', p, vh).transpose(0, 2, 1, 3).reshape(B, T, D)
    attn = o @ wo + bo
    x = x + attn
    x = ln(x, g2, be2)
    h = jnp.maximum(x @ w1 + bl1, 0.0) @ w2 + bl2
    x = x + h
    x = ln(x, g3, be3)
    return x


def make_params(key):
    ks = jax.random.split(key, 12)
    f32 = jnp.float32
    g1 = jnp.ones((1, D_MODEL), f32)
    be1 = jnp.zeros((1, D_MODEL), f32)
    # attention in-proj (stored pre-transposed: x @ W gives x @ W_torch.T)
    wq = 0.05 * jax.random.normal(ks[0], (D_MODEL, D_MODEL), f32)
    wk = 0.05 * jax.random.normal(ks[1], (D_MODEL, D_MODEL), f32)
    wv = 0.05 * jax.random.normal(ks[2], (D_MODEL, D_MODEL), f32)
    bq = 0.05 * jax.random.normal(ks[3], (1, D_MODEL), f32)
    bk = 0.05 * jax.random.normal(ks[4], (1, D_MODEL), f32)
    bv = 0.05 * jax.random.normal(ks[5], (1, D_MODEL), f32)
    wo = 0.05 * jax.random.normal(ks[6], (D_MODEL, D_MODEL), f32)
    bo = 0.05 * jax.random.normal(ks[7], (1, D_MODEL), f32)
    g2 = jnp.ones((1, D_MODEL), f32)
    be2 = jnp.zeros((1, D_MODEL), f32)
    w1 = 0.05 * jax.random.normal(ks[8], (D_MODEL, DIM_FF), f32)
    bl1 = 0.05 * jax.random.normal(ks[9], (1, DIM_FF), f32)
    w2 = 0.05 * jax.random.normal(ks[10], (DIM_FF, D_MODEL), f32)
    bl2 = 0.05 * jax.random.normal(ks[11], (1, D_MODEL), f32)
    g3 = jnp.ones((1, D_MODEL), f32)
    be3 = jnp.zeros((1, D_MODEL), f32)
    return (g1, be1, wq, wk, wv, bq, bk, bv, wo, bo,
            g2, be2, w1, bl1, w2, bl2, g3, be3)


if __name__ == "__main__":
    key = jax.random.PRNGKey(0)
    k_t, k_m, k_p = jax.random.split(key, 3)

    B, T, S = 2, 8, 16
    tgt = jax.random.normal(k_t, (B, T, D_MODEL), jnp.float32)
    memory = jax.random.normal(k_m, (B, S, D_MODEL), jnp.float32)
    params = make_params(k_p)

    out = decoder_layer(tgt, memory, params)
    out = jax.block_until_ready(out)

    ref = reference(tgt, memory, params)
    assert out.shape == (B, T, D_MODEL)
    # Softmax normalization is now exact (no approx reciprocal); remaining
    # tolerance covers default f32 MXU matmul precision differences between
    # the XLA-compiled reference and the Mosaic kernel.
    err = float(jnp.max(jnp.abs(out - ref)))
    assert jnp.allclose(out, ref, atol=2e-3, rtol=2e-3), err

    print("KERNEL_OK")
</pallas_src>

<mosaic_0001>
module attributes {stable_mosaic.version = 11 : i64} {
  func.func @kernel(%arg0: i32, %arg1: memref<16x32xf32, #tpu.memory_space<vmem>>, %arg2: memref<32x32xf32, #tpu.memory_space<vmem>>, %arg3: memref<64x224xf32, #tpu.memory_space<vmem>>, %arg4: memref<11x64xf32, #tpu.memory_space<vmem>>, %arg5: memref<16x32xf32, #tpu.memory_space<vmem>>) attributes {dimension_semantics = [#tpu.dimension_semantics<parallel>], iteration_bounds = array<i64: 1>, scalar_prefetch = 0 : i64, scratch_operands = 0 : i64, tpu.core_type = #tpu.core_type<tc>, window_params = [{transform_indices = @transform_0, window_bounds = array<i64: 16, 32>}, {transform_indices = @transform_1, window_bounds = array<i64: 32, 32>}, {pipeline_mode = #tpu.pipeline_mode<synchronous>, transform_indices = @transform_2, window_bounds = array<i64: 64, 224>}, {pipeline_mode = #tpu.pipeline_mode<synchronous>, transform_indices = @transform_3, window_bounds = array<i64: 11, 64>}, {transform_indices = @transform_4, window_bounds = array<i64: 16, 32>}]} {
    %c0 = arith.constant 0 : index
    %c0_0 = arith.constant 0 : index
    %0 = vector.load %arg1[%c0, %c0_0] : memref<16x32xf32, #tpu.memory_space<vmem>>, vector<16x32xf32>
    %c0_1 = arith.constant 0 : index
    %c0_2 = arith.constant 0 : index
    %1 = vector.load %arg2[%c0_1, %c0_2] : memref<32x32xf32, #tpu.memory_space<vmem>>, vector<32x32xf32>
    %c0_3 = arith.constant 0 : index
    %c0_4 = arith.constant 0 : index
    %2 = vector.load %arg3[%c0_3, %c0_4] : memref<64x224xf32, #tpu.memory_space<vmem>>, vector<64x224xf32>
    %c0_5 = arith.constant 0 : index
    %c0_6 = arith.constant 0 : index
    %3 = vector.load %arg4[%c0_5, %c0_6] : memref<11x64xf32, #tpu.memory_space<vmem>>, vector<11x64xf32>
    %cst = arith.constant 2.000000e+00 : f32
    %4 = vector.broadcast %cst : f32 to vector<16x32xf32>
    %5 = arith.mulf %4, %0 : vector<16x32xf32>
    %6 = vector.extract_strided_slice %3 {offsets = [0, 0], sizes = [1, 32], strides = [1, 1]} : vector<11x64xf32> to vector<1x32xf32>
    %7 = vector.extract_strided_slice %3 {offsets = [1, 0], sizes = [1, 32], strides = [1, 1]} : vector<11x64xf32> to vector<1x32xf32>
    %cst_7 = arith.constant dense<0.000000e+00> : vector<16xf32>
    %8 = vector.multi_reduction <add>, %5, %cst_7 [1] : vector<16x32xf32> to vector<16xf32>
    %9 = vector.shape_cast %8 : vector<16xf32> to vector<16x1xf32>
    %cst_8 = arith.constant 3.200000e+01 : f32
    %10 = vector.broadcast %cst_8 : f32 to vector<16x1xf32>
    %11 = arith.divf %9, %10 : vector<16x1xf32>
    %12 = vector.broadcast %11 : vector<16x1xf32> to vector<16x32xf32>
    %13 = arith.subf %5, %12 : vector<16x32xf32>
    %14 = arith.mulf %13, %13 : vector<16x32xf32>
    %cst_9 = arith.constant dense<0.000000e+00> : vector<16xf32>
    %15 = vector.multi_reduction <add>, %14, %cst_9 [1] : vector<16x32xf32> to vector<16xf32>
    %16 = vector.shape_cast %15 : vector<16xf32> to vector<16x1xf32>
    %cst_10 = arith.constant 3.200000e+01 : f32
    %17 = vector.broadcast %cst_10 : f32 to vector<16x1xf32>
    %18 = arith.divf %16, %17 : vector<16x1xf32>
    %19 = vector.broadcast %11 : vector<16x1xf32> to vector<16x32xf32>
    %20 = arith.subf %5, %19 : vector<16x32xf32>
    %cst_11 = arith.constant 9.99999974E-6 : f32
    %21 = vector.broadcast %cst_11 : f32 to vector<16x1xf32>
    %22 = arith.addf %18, %21 : vector<16x1xf32>
    %23 = math.rsqrt %22 : vector<16x1xf32>
    %24 = vector.broadcast %23 : vector<16x1xf32> to vector<16x32xf32>
    %25 = arith.mulf %20, %24 : vector<16x32xf32>
    %26 = vector.broadcast %6 : vector<1x32xf32> to vector<16x32xf32>
    %27 = arith.mulf %25, %26 : vector<16x32xf32>
    %28 = vector.broadcast %7 : vector<1x32xf32> to vector<16x32xf32>
    %29 = arith.addf %27, %28 : vector<16x32xf32>
    %30 = tpu.concatenate %29, %1 in 0 : vector<16x32xf32>, vector<32x32xf32> -> vector<48x32xf32>
    %31 = vector.extract_strided_slice %2 {offsets = [0, 0], sizes = [32, 96], strides = [1, 1]} : vector<64x224xf32> to vector<32x96xf32>
    %cst_12 = arith.constant dense<0.000000e+00> : vector<48x96xf32>
    %32 = tpu.matmul %30, %31, %cst_12 {dimension_numbers = #tpu.dot_dimension_numbers<[1], [0], [0], [1], [0, 0, 1, 1], [], []>} : vector<48x32xf32>, vector<32x96xf32>, vector<48x96xf32> -> vector<48x96xf32>
    %33 = vector.extract_strided_slice %32 {offsets = [0, 0], sizes = [16, 32], strides = [1, 1]} : vector<48x96xf32> to vector<16x32xf32>
    %34 = vector.extract_strided_slice %3 {offsets = [2, 0], sizes = [1, 32], strides = [1, 1]} : vector<11x64xf32> to vector<1x32xf32>
    %35 = vector.broadcast %34 : vector<1x32xf32> to vector<16x32xf32>
    %36 = arith.addf %33, %35 : vector<16x32xf32>
    %37 = vector.extract_strided_slice %32 {offsets = [16, 32], sizes = [32, 64], strides = [1, 1]} : vector<48x96xf32> to vector<32x64xf32>
    %38 = vector.extract_strided_slice %3 {offsets = [3, 0], sizes = [1, 64], strides = [1, 1]} : vector<11x64xf32> to vector<1x64xf32>
    %39 = vector.broadcast %38 : vector<1x64xf32> to vector<32x64xf32>
    %40 = arith.addf %37, %39 : vector<32x64xf32>
    %41 = vector.shape_cast %36 : vector<16x32xf32> to vector<2x8x32xf32>
    %42 = vector.extract_strided_slice %40 {offsets = [0, 0], sizes = [32, 32], strides = [1, 1]} : vector<32x64xf32> to vector<32x32xf32>
    %43 = vector.shape_cast %42 : vector<32x32xf32> to vector<2x16x32xf32>
    %44 = vector.extract_strided_slice %40 {offsets = [0, 32], sizes = [32, 32], strides = [1, 1]} : vector<32x64xf32> to vector<32x32xf32>
    %45 = vector.shape_cast %44 : vector<32x32xf32> to vector<2x16x32xf32>
    %46 = vector.extract_strided_slice %41 {offsets = [0, 0, 0], sizes = [2, 8, 8], strides = [1, 1, 1]} : vector<2x8x32xf32> to vector<2x8x8xf32>
    %47 = vector.extract_strided_slice %41 {offsets = [0, 0, 8], sizes = [2, 8, 8], strides = [1, 1, 1]} : vector<2x8x32xf32> to vector<2x8x8xf32>
    %48 = vector.extract_strided_slice %41 {offsets = [0, 0, 16], sizes = [2, 8, 8], strides = [1, 1, 1]} : vector<2x8x32xf32> to vector<2x8x8xf32>
    %49 = vector.extract_strided_slice %41 {offsets = [0, 0, 24], sizes = [2, 8, 8], strides = [1, 1, 1]} : vector<2x8x32xf32> to vector<2x8x8xf32>
    %50 = tpu.concatenate %46, %47, %48, %49 in 0 : vector<2x8x8xf32>, vector<2x8x8xf32>, vector<2x8x8xf32>, vector<2x8x8xf32> -> vector<8x8x8xf32>
    %51 = vector.extract_strided_slice %43 {offsets = [0, 0, 0], sizes = [2, 16, 8], strides = [1, 1, 1]} : vector<2x16x32xf32> to vector<2x16x8xf32>
    %52 = vector.extract_strided_slice %43 {offsets = [0, 0, 8], sizes = [2, 16, 8], strides = [1, 1, 1]} : vector<2x16x32xf32> to vector<2x16x8xf32>
    %53 = vector.extract_strided_slice %43 {offsets = [0, 0, 16], sizes = [2, 16, 8], strides = [1, 1, 1]} : vector<2x16x32xf32> to vector<2x16x8xf32>
    %54 = vector.extract_strided_slice %43 {offsets = [0, 0, 24], sizes = [2, 16, 8], strides = [1, 1, 1]} : vector<2x16x32xf32> to vector<2x16x8xf32>
    %55 = tpu.concatenate %51, %52, %53, %54 in 0 : vector<2x16x8xf32>, vector<2x16x8xf32>, vector<2x16x8xf32>, vector<2x16x8xf32> -> vector<8x16x8xf32>
    %56 = vector.extract_strided_slice %45 {offsets = [0, 0, 0], sizes = [2, 16, 8], strides = [1, 1, 1]} : vector<2x16x32xf32> to vector<2x16x8xf32>
    %57 = vector.extract_strided_slice %45 {offsets = [0, 0, 8], sizes = [2, 16, 8], strides = [1, 1, 1]} : vector<2x16x32xf32> to vector<2x16x8xf32>
    %58 = vector.extract_strided_slice %45 {offsets = [0, 0, 16], sizes = [2, 16, 8], strides = [1, 1, 1]} : vector<2x16x32xf32> to vector<2x16x8xf32>
    %59 = vector.extract_strided_slice %45 {offsets = [0, 0, 24], sizes = [2, 16, 8], strides = [1, 1, 1]} : vector<2x16x32xf32> to vector<2x16x8xf32>
    %60 = tpu.concatenate %56, %57, %58, %59 in 0 : vector<2x16x8xf32>, vector<2x16x8xf32>, vector<2x16x8xf32>, vector<2x16x8xf32> -> vector<8x16x8xf32>
    "tpu.trace_start"() <{level = 10 : i32, message = "btd,bsd->bts"}> : () -> ()
    %cst_13 = arith.constant dense<0.000000e+00> : vector<8x8x16xf32>
    %61 = tpu.matmul %50, %55, %cst_13 {dimension_numbers = #tpu.dot_dimension_numbers<[2], [2], [1], [1], [0, 0, 0, 1, 1, 1], [0], [0]>} : vector<8x8x8xf32>, vector<8x16x8xf32>, vector<8x8x16xf32> -> vector<8x8x16xf32>
    "tpu.trace_stop"() : () -> ()
    %cst_14 = arith.constant dense<0xFF800000> : vector<8x8xf32>
    %62 = vector.multi_reduction <maximumf>, %61, %cst_14 [2] : vector<8x8x16xf32> to vector<8x8xf32>
    %63 = vector.shape_cast %62 : vector<8x8xf32> to vector<8x8x1xf32>
    %64 = vector.broadcast %63 : vector<8x8x1xf32> to vector<8x8x16xf32>
    %65 = arith.subf %61, %64 : vector<8x8x16xf32>
    %66 = math.exp %65 : vector<8x8x16xf32>
    %cst_15 = arith.constant dense<0.000000e+00> : vector<8x8xf32>
    %67 = vector.multi_reduction <add>, %66, %cst_15 [2] : vector<8x8x16xf32> to vector<8x8xf32>
    %68 = vector.shape_cast %67 : vector<8x8xf32> to vector<8x8x1xf32>
    %69 = vector.broadcast %68 : vector<8x8x1xf32> to vector<8x8x16xf32>
    %70 = arith.divf %66, %69 : vector<8x8x16xf32>
    "tpu.trace_start"() <{level = 10 : i32, message = "bts,bsd->btd"}> : () -> ()
    %cst_16 = arith.constant dense<0.000000e+00> : vector<8x8x8xf32>
    %71 = tpu.matmul %70, %60, %cst_16 {dimension_numbers = #tpu.dot_dimension_numbers<[2], [1], [1], [2], [0, 0, 0, 1, 1, 2], [0], [0]>} : vector<8x8x16xf32>, vector<8x16x8xf32>, vector<8x8x8xf32> -> vector<8x8x8xf32>
    "tpu.trace_stop"() : () -> ()
    %72 = vector.extract_strided_slice %71 {offsets = [0, 0, 0], sizes = [2, 8, 8], strides = [1, 1, 1]} : vector<8x8x8xf32> to vector<2x8x8xf32>
    %73 = vector.shape_cast %72 : vector<2x8x8xf32> to vector<16x8xf32>
    %74 = vector.extract_strided_slice %71 {offsets = [2, 0, 0], sizes = [2, 8, 8], strides = [1, 1, 1]} : vector<8x8x8xf32> to vector<2x8x8xf32>
    %75 = vector.shape_cast %74 : vector<2x8x8xf32> to vector<16x8xf32>
    %76 = vector.extract_strided_slice %71 {offsets = [4, 0, 0], sizes = [2, 8, 8], strides = [1, 1, 1]} : vector<8x8x8xf32> to vector<2x8x8xf32>
    %77 = vector.shape_cast %76 : vector<2x8x8xf32> to vector<16x8xf32>
    %78 = vector.extract_strided_slice %71 {offsets = [6, 0, 0], sizes = [2, 8, 8], strides = [1, 1, 1]} : vector<8x8x8xf32> to vector<2x8x8xf32>
    %79 = vector.shape_cast %78 : vector<2x8x8xf32> to vector<16x8xf32>
    %80 = tpu.concatenate %73, %75, %77, %79 in 1 : vector<16x8xf32>, vector<16x8xf32>, vector<16x8xf32>, vector<16x8xf32> -> vector<16x32xf32>
    %81 = vector.extract_strided_slice %2 {offsets = [0, 96], sizes = [32, 32], strides = [1, 1]} : vector<64x224xf32> to vector<32x32xf32>
    %cst_17 = arith.constant dense<0.000000e+00> : vector<16x32xf32>
    %82 = tpu.matmul %80, %81, %cst_17 {dimension_numbers = #tpu.dot_dimension_numbers<[1], [0], [0], [1], [0, 0, 1, 1], [], []>} : vector<16x32xf32>, vector<32x32xf32>, vector<16x32xf32> -> vector<16x32xf32>
    %83 = vector.extract_strided_slice %3 {offsets = [4, 0], sizes = [1, 32], strides = [1, 1]} : vector<11x64xf32> to vector<1x32xf32>
    %84 = vector.broadcast %83 : vector<1x32xf32> to vector<16x32xf32>
    %85 = arith.addf %82, %84 : vector<16x32xf32>
    %86 = arith.addf %29, %85 : vector<16x32xf32>
    %87 = vector.extract_strided_slice %3 {offsets = [5, 0], sizes = [1, 32], strides = [1, 1]} : vector<11x64xf32> to vector<1x32xf32>
    %88 = vector.extract_strided_slice %3 {offsets = [6, 0], sizes = [1, 32], strides = [1, 1]} : vector<11x64xf32> to vector<1x32xf32>
    %cst_18 = arith.constant dense<0.000000e+00> : vector<16xf32>
    %89 = vector.multi_reduction <add>, %86, %cst_18 [1] : vector<16x32xf32> to vector<16xf32>
    %90 = vector.shape_cast %89 : vector<16xf32> to vector<16x1xf32>
    %cst_19 = arith.constant 3.200000e+01 : f32
    %91 = vector.broadcast %cst_19 : f32 to vector<16x1xf32>
    %92 = arith.divf %90, %91 : vector<16x1xf32>
    %93 = vector.broadcast %92 : vector<16x1xf32> to vector<16x32xf32>
    %94 = arith.subf %86, %93 : vector<16x32xf32>
    %95 = arith.mulf %94, %94 : vector<16x32xf32>
    %cst_20 = arith.constant dense<0.000000e+00> : vector<16xf32>
    %96 = vector.multi_reduction <add>, %95, %cst_20 [1] : vector<16x32xf32> to vector<16xf32>
    %97 = vector.shape_cast %96 : vector<16xf32> to vector<16x1xf32>
    %cst_21 = arith.constant 3.200000e+01 : f32
    %98 = vector.broadcast %cst_21 : f32 to vector<16x1xf32>
    %99 = arith.divf %97, %98 : vector<16x1xf32>
    %100 = vector.broadcast %92 : vector<16x1xf32> to vector<16x32xf32>
    %101 = arith.subf %86, %100 : vector<16x32xf32>
    %cst_22 = arith.constant 9.99999974E-6 : f32
    %102 = vector.broadcast %cst_22 : f32 to vector<16x1xf32>
    %103 = arith.addf %99, %102 : vector<16x1xf32>
    %104 = math.rsqrt %103 : vector<16x1xf32>
    %105 = vector.broadcast %104 : vector<16x1xf32> to vector<16x32xf32>
    %106 = arith.mulf %101, %105 : vector<16x32xf32>
    %107 = vector.broadcast %87 : vector<1x32xf32> to vector<16x32xf32>
    %108 = arith.mulf %106, %107 : vector<16x32xf32>
    %109 = vector.broadcast %88 : vector<1x32xf32> to vector<16x32xf32>
    %110 = arith.addf %108, %109 : vector<16x32xf32>
    %111 = vector.extract_strided_slice %2 {offsets = [0, 128], sizes = [32, 64], strides = [1, 1]} : vector<64x224xf32> to vector<32x64xf32>
    %cst_23 = arith.constant dense<0.000000e+00> : vector<16x64xf32>
    %112 = tpu.matmul %110, %111, %cst_23 {dimension_numbers = #tpu.dot_dimension_numbers<[1], [0], [0], [1], [0, 0, 1, 1], [], []>} : vector<16x32xf32>, vector<32x64xf32>, vector<16x64xf32> -> vector<16x64xf32>
    %113 = vector.extract_strided_slice %3 {offsets = [7, 0], sizes = [1, 64], strides = [1, 1]} : vector<11x64xf32> to vector<1x64xf32>
    %114 = vector.broadcast %113 : vector<1x64xf32> to vector<16x64xf32>
    %115 = arith.addf %112, %114 : vector<16x64xf32>
    %cst_24 = arith.constant 0.000000e+00 : f32
    %116 = vector.broadcast %cst_24 : f32 to vector<16x64xf32>
    %117 = arith.maximumf %115, %116 : vector<16x64xf32>
    %118 = vector.extract_strided_slice %2 {offsets = [0, 192], sizes = [64, 32], strides = [1, 1]} : vector<64x224xf32> to vector<64x32xf32>
    %cst_25 = arith.constant dense<0.000000e+00> : vector<16x32xf32>
    %119 = tpu.matmul %117, %118, %cst_25 {dimension_numbers = #tpu.dot_dimension_numbers<[1], [0], [0], [1], [0, 0, 1, 1], [], []>} : vector<16x64xf32>, vector<64x32xf32>, vector<16x32xf32> -> vector<16x32xf32>
    %120 = vector.extract_strided_slice %3 {offsets = [8, 0], sizes = [1, 32], strides = [1, 1]} : vector<11x64xf32> to vector<1x32xf32>
    %121 = vector.broadcast %120 : vector<1x32xf32> to vector<16x32xf32>
    %122 = arith.addf %119, %121 : vector<16x32xf32>
    %123 = arith.addf %110, %122 : vector<16x32xf32>
    %124 = vector.extract_strided_slice %3 {offsets = [9, 0], sizes = [1, 32], strides = [1, 1]} : vector<11x64xf32> to vector<1x32xf32>
    %125 = vector.extract_strided_slice %3 {offsets = [10, 0], sizes = [1, 32], strides = [1, 1]} : vector<11x64xf32> to vector<1x32xf32>
    %cst_26 = arith.constant dense<0.000000e+00> : vector<16xf32>
    %126 = vector.multi_reduction <add>, %123, %cst_26 [1] : vector<16x32xf32> to vector<16xf32>
    %127 = vector.shape_cast %126 : vector<16xf32> to vector<16x1xf32>
    %cst_27 = arith.constant 3.200000e+01 : f32
    %128 = vector.broadcast %cst_27 : f32 to vector<16x1xf32>
    %129 = arith.divf %127, %128 : vector<16x1xf32>
    %130 = vector.broadcast %129 : vector<16x1xf32> to vector<16x32xf32>
    %131 = arith.subf %123, %130 : vector<16x32xf32>
    %132 = arith.mulf %131, %131 : vector<16x32xf32>
    %cst_28 = arith.constant dense<0.000000e+00> : vector<16xf32>
    %133 = vector.multi_reduction <add>, %132, %cst_28 [1] : vector<16x32xf32> to vector<16xf32>
    %134 = vector.shape_cast %133 : vector<16xf32> to vector<16x1xf32>
    %cst_29 = arith.constant 3.200000e+01 : f32
    %135 = vector.broadcast %cst_29 : f32 to vector<16x1xf32>
    %136 = arith.divf %134, %135 : vector<16x1xf32>
    %137 = vector.broadcast %129 : vector<16x1xf32> to vector<16x32xf32>
    %138 = arith.subf %123, %137 : vector<16x32xf32>
    %cst_30 = arith.constant 9.99999974E-6 : f32
    %139 = vector.broadcast %cst_30 : f32 to vector<16x1xf32>
    %140 = arith.addf %136, %139 : vector<16x1xf32>
    %141 = math.rsqrt %140 : vector<16x1xf32>
    %142 = vector.broadcast %141 : vector<16x1xf32> to vector<16x32xf32>
    %143 = arith.mulf %138, %142 : vector<16x32xf32>
    %144 = vector.broadcast %124 : vector<1x32xf32> to vector<16x32xf32>
    %145 = arith.mulf %143, %144 : vector<16x32xf32>
    %146 = vector.broadcast %125 : vector<1x32xf32> to vector<16x32xf32>
    %147 = arith.addf %145, %146 : vector<16x32xf32>
    %c0_31 = arith.constant 0 : index
    %c0_32 = arith.constant 0 : index
    %148 = vector.load %arg5[%c0_31, %c0_32] : memref<16x32xf32, #tpu.memory_space<vmem>>, vector<16x32xf32>
    tpu.vector_store %arg5[%c0_31, %c0_32], %147 {strides = array<i32>} : memref<16x32xf32, #tpu.memory_space<vmem>>, vector<16x32xf32>,
    return
  }
  func.func @transform_0(%arg0: i32) -> (i32, i32) {
    %c0_i32 = arith.constant 0 : i32
    %c0_i32_0 = arith.constant 0 : i32
    return %arg0, %c0_i32 : i32, i32
  }
  func.func @transform_1(%arg0: i32) -> (i32, i32) {
    %c0_i32 = arith.constant 0 : i32
    %c0_i32_0 = arith.constant 0 : i32
    return %arg0, %c0_i32 : i32, i32
  }
  func.func @transform_2(%arg0: i32) -> (i32, i32) {
    %c0_i32 = arith.constant 0 : i32
    %c0_i32_0 = arith.constant 0 : i32
    %c0_i32_1 = arith.constant 0 : i32
    return %c0_i32, %c0_i32_0 : i32, i32
  }
  func.func @transform_3(%arg0: i32) -> (i32, i32) {
    %c0_i32 = arith.constant 0 : i32
    %c0_i32_0 = arith.constant 0 : i32
    %c0_i32_1 = arith.constant 0 : i32
    return %c0_i32, %c0_i32_0 : i32, i32
  }
  func.func @transform_4(%arg0: i32) -> (i32, i32) {
    %c0_i32 = arith.constant 0 : i32
    %c0_i32_0 = arith.constant 0 : i32
    return %arg0, %c0_i32 : i32, i32
  }
}

</mosaic_0001>

<llo_original>
// kernel: tpu_custom_call.1
$region0: #{tpu_custom_call.1}
  #allocation0 [shape = 'u32[]', space=smem, size = 0x4, offset = 0x4, fixed_abs, tag = 'smem constant byte address 0x4 - core index']
  #allocation1 [shape = 'u32[144,128]{1,0:T(1,128)}', space=vmem, size = 0x12000, scoped, tag = 'internal scratch']
  %s0 = inlined_call_operand.hbm [shape: f32[16,32], index: 0, kind: input, shape index: {}]
  %s1 = inlined_call_operand.hbm [shape: f32[32,32], index: 1, kind: input, shape index: {}]
  %s2 = inlined_call_operand.hbm [shape: f32[64,224], index: 2, kind: input, shape index: {}]
  %s3 = inlined_call_operand.hbm [shape: f32[11,64], index: 3, kind: input, shape index: {}]
  %s4 = inlined_call_operand.hbm [shape: f32[16,32], index: 4, kind: output, shape index: {}]
  %s5 = sld [smem:[#allocation0]]
  $region42: #{tpu_custom_call.1} parent=0
    _
  %s7 = ssub.s32 1, %s5
  %s8 = scalar_select 0, %s7, %s5
  $region1: #{tpu_custom_call.1} parent=0
    #allocation2 [shape = 'u8[8192]{0}', space=vmem, size = 0x2000, scoped, tag = 'input window, operand 0, single buffered']
    #allocation3 [shape = 's32[1]{0}', space=sflag, size = 0x4, scoped, tag = 'scoped memory for tpu_custom_call.1']
    #allocation4 [shape = 's32[1]{0}', space=sflag, size = 0x4, scoped, tag = 'scoped memory for tpu_custom_call.1']
    #allocation5 [shape = 'u8[16384]{0}', space=vmem, size = 0x4000, scoped, tag = 'input window, operand 1, single buffered']
    #allocation6 [shape = 's32[1]{0}', space=sflag, size = 0x4, scoped, tag = 'scoped memory for tpu_custom_call.1']
    #allocation7 [shape = 'u8[65536]{0}', space=vmem, size = 0x10000, scoped, tag = 'input window, operand 2, single buffered']
    #allocation8 [shape = 'u8[8192]{0}', space=vmem, size = 0x2000, scoped, tag = 'input window, operand 3, single buffered']
    #allocation9 [shape = 's32[1]{0}', space=sflag, size = 0x4, scoped, tag = 'scoped memory for tpu_custom_call.1']
    #allocation10 [shape = 'u8[8192]{0}', space=vmem, size = 0x2000, scoped, tag = 'output window, operand 0, single buffered']
    %9 = vsyncpa [#allocation3], 0
    %10 = vsyncpa [#allocation6], 0
    %11 = vsyncpa [#allocation9], 0
    %12 = vsyncpa [#allocation4], 0
    // Predicated region
    $region2: #{tpu_custom_call.1} parent=1 // pred_check
      _
    $region3: #{tpu_custom_call.1} parent=1 // pred_check_branch
      %14 = sbr.rel (0) target = $region5
    $region4: #{tpu_custom_call.1} parent=1 // pred_region
      %s16 = ssub.s32 256, 256
      %17 = vsyncadd [#allocation3], %s16
      %s18 = sshll.u32 [#allocation2], 4
      %s19 = int_to_ptr.vmem [resolvable:$true] %s18
      %24 = dma.hbm_to_vmem [thread:$0]  %s0, 256, %s19, [#allocation3], 128, 128, 8
    $region5: #{tpu_custom_call.1} parent=1 // pred_fallthru
      _
    // Predicated region
    $region6: #{tpu_custom_call.1} parent=1 // pred_check
      _
    $region7: #{tpu_custom_call.1} parent=1 // pred_check_branch
      %26 = sbr.rel (0) target = $region9
    $region8: #{tpu_custom_call.1} parent=1 // pred_region
      %s28 = ssub.s32 512, 512
      %29 = vsyncadd [#allocation6], %s28
      %s30 = sshll.u32 [#allocation5], 4
      %s31 = int_to_ptr.vmem [resolvable:$true] %s30
      %36 = dma.hbm_to_vmem [thread:$0]  %s1, 512, %s31, [#allocation6], 128, 128, 8
    $region9: #{tpu_custom_call.1} parent=1 // pred_fallthru
      _
    // Predicated region
    $region10: #{tpu_custom_call.1} parent=1 // pred_check
      _
    $region11: #{tpu_custom_call.1} parent=1 // pred_check_branch
      %38 = sbr.rel (0) target = $region13
    $region12: #{tpu_custom_call.1} parent=1 // pred_region
      %s40 = ssub.s32 2048, 2048
      %41 = vsyncadd [#allocation6], %s40
      %s42 = sshll.u32 [#allocation7], 4
      %s43 = int_to_ptr.vmem [resolvable:$true] %s42
      %48 = dma.hbm_to_vmem [thread:$0]  %s2, 2048, %s43, [#allocation6], 256, 256, 16
    $region13: #{tpu_custom_call.1} parent=1 // pred_fallthru
      _
    // Predicated region
    $region14: #{tpu_custom_call.1} parent=1 // pred_check
      _
    $region15: #{tpu_custom_call.1} parent=1 // pred_check_branch
      %50 = sbr.rel (0) target = $region17
    $region16: #{tpu_custom_call.1} parent=1 // pred_region
      %s52 = ssub.s32 256, 256
      %53 = vsyncadd [#allocation9], %s52
      %s54 = sshll.u32 [#allocation8], 4
      %s55 = int_to_ptr.vmem [resolvable:$true] %s54
      %60 = dma.hbm_to_vmem [thread:$0]  %s3, 256, %s55, [#allocation9], 128, 128, 8
    $region17: #{tpu_custom_call.1} parent=1 // pred_fallthru
      _
    // Predicated region
    $region18: #{tpu_custom_call.1} parent=1 // pred_check
      _
    $region19: #{tpu_custom_call.1} parent=1 // pred_check_branch
      %62 = sbr.rel (0) target = $region21
    $region20: #{tpu_custom_call.1} parent=1 // pred_region
      %63 = dma.done [#allocation3], 256
    $region21: #{tpu_custom_call.1} parent=1 // pred_fallthru
      _
    // Predicated region
    $region22: #{tpu_custom_call.1} parent=1 // pred_check
      _
    $region23: #{tpu_custom_call.1} parent=1 // pred_check_branch
      %65 = sbr.rel (0) target = $region25
    $region24: #{tpu_custom_call.1} parent=1 // pred_region
      %66 = dma.done [#allocation6], 512
    $region25: #{tpu_custom_call.1} parent=1 // pred_fallthru
      _
    // Predicated region
    $region26: #{tpu_custom_call.1} parent=1 // pred_check
      _
    $region27: #{tpu_custom_call.1} parent=1 // pred_check_branch
      %68 = sbr.rel (0) target = $region29
    $region28: #{tpu_custom_call.1} parent=1 // pred_region
      %69 = dma.done [#allocation6], 2048
    $region29: #{tpu_custom_call.1} parent=1 // pred_fallthru
      _
    // Predicated region
    $region30: #{tpu_custom_call.1} parent=1 // pred_check
      _
    $region31: #{tpu_custom_call.1} parent=1 // pred_check_branch
      %71 = sbr.rel (0) target = $region33
    $region32: #{tpu_custom_call.1} parent=1 // pred_region
      %72 = dma.done [#allocation9], 256
    $region33: #{tpu_custom_call.1} parent=1 // pred_fallthru
      _
    %v73 = vld [vmem:[#allocation2] sm:$0xff]
    %v74 = vld [vmem:[#allocation2 + $0x8] sm:$0xff]
    %v75 = vld [vmem:[#allocation5] sm:$0xff]
    %v76 = vld [vmem:[#allocation5 + $0x8] sm:$0xff]
    %v77 = vld [vmem:[#allocation5 + $0x10] sm:$0xff]
    %v78 = vld [vmem:[#allocation5 + $0x18] sm:$0xff]
    %v79 = vld [vmem:[#allocation7] sm:$0xff]
    %v80 = vld [vmem:[#allocation7 + $0x8] sm:$0xff]
    %v81 = vld [vmem:[#allocation7 + $0x10] sm:$0xff]
    %v82 = vld [vmem:[#allocation7 + $0x18] sm:$0xff]
    %v83 = vld [vmem:[#allocation7 + $0x20] sm:$0xff]
    %v84 = vld [vmem:[#allocation7 + $0x28] sm:$0xff]
    %v85 = vld [vmem:[#allocation7 + $0x30] sm:$0xff]
    %v86 = vld [vmem:[#allocation7 + $0x38] sm:$0xff]
    %v87 = vld [vmem:[#allocation7 + $0x48] sm:$0xff]
    %v88 = vld [vmem:[#allocation7 + $0x58] sm:$0xff]
    %v89 = vld [vmem:[#allocation7 + $0x68] sm:$0xff]
    %v90 = vld [vmem:[#allocation7 + $0x78] sm:$0xff]
    %v91 = vld [vmem:[#allocation8] sm:$0xff]
    %v92 = vld [vmem:[#allocation8 + $0x8] sm:$0x7]
    %v93 = vmul.f32 %v73, 2.0
    %v94 = vmul.f32 %v74, 2.0
    %vm95 = vcmask 261120
    %v96 = vsel %vm95, %v93, 0.0
    %97 = vadd.xlane.f32.xlu0 %v96
    %v98 = vpop.xlane.xlu0 %97
    %v99 = vsel %vm95, %v94, 0.0
    %100 = vadd.xlane.f32.xlu0 %v99
    %v101 = vpop.xlane.xlu0 %100
    %v102 = vrcp.pop 32.0
    %v103 = vmul.f32 %v98, %v102
    %v104 = vmul.f32 %v101, %v102
    %v105 = vsub.f32 %v93, %v103
    %v106 = vsub.f32 %v94, %v104
    %v107 = vmul.f32 %v105, %v105
    %v108 = vmul.f32 %v106, %v106
    %v109 = vsel %vm95, %v107, 0.0
    %110 = vadd.xlane.f32.xlu0 %v109
    %v111 = vpop.xlane.xlu0 %110
    %v112 = vsel %vm95, %v108, 0.0
    %113 = vadd.xlane.f32.xlu0 %v112
    %v114 = vpop.xlane.xlu0 %113
    %v115 = vmul.f32 %v111, %v102
    %v116 = vmul.f32 %v114, %v102
    %v117 = vadd.f32 %v115, 1e-05
    %v118 = vadd.f32 %v116, 1e-05
    %v119 = vrsqrt.pop %v117
    %v120 = vrsqrt.pop %v118
    %v121 = vmul.f32 %v105, %v119
    %v122 = vmul.f32 %v106, %v120
    %v123 = vlaneseq
    %v124 = vshrl.u32 %v123, 7
    %v125 = vsub.s32 0, %v124
    %v126 = vrot.slane %v91, %v125
    %v127 = vmul.f32 %v121, %v126
    %v128 = vmul.f32 %v122, %v126
    %v129 = vlaneseq
    %v130 = vshrl.u32 %v129, 7
    %v131 = vsub.s32 1, %v130
    %v132 = vrot.slane %v91, %v131
    %v133 = vadd.f32 %v127, %v132
    %v134 = vadd.f32 %v128, %v132
    %v136 = vsel %vm95, %v133, 0
    %v139 = vsel %vm95, %v134, 0
    %v142 = vsel %vm95, %v75, 0
    %v145 = vsel %vm95, %v76, 0
    %v148 = vsel %vm95, %v77, 0
    %v151 = vsel %vm95, %v78, 0
    %153 = vmatprep.subr.mxu0 0.0
    %154 = vmatpush1.msra.mxu0 %v79
    %155 = vmatprep.subr.mxu0 0.0
    %156 = vmatpush1.msra.mxu0 %v81
    %157 = vmatprep.subr.mxu0 0.0
    %158 = vmatpush1.msra.mxu0 %v83
    %159 = vmatprep.subr.mxu0 0.0
    %160 = vmatpush1.msra.mxu0 %v85
    %161 = vmatprep.subr.mxu0 0.0
    %162 = vmatpush1.msra.mxu0 0.0
    %163 = vmatprep.subr.mxu0 0.0
    %164 = vmatpush1.msra.mxu0 0.0
    %165 = vmatprep.subr.mxu0 0.0
    %166 = vmatpush1.msra.mxu0 0.0
    %167 = vmatprep.subr.mxu0 0.0
    %168 = vmatpush1.msra.mxu0 0.0
    %169 = vmatprep.subr.mxu0 0.0
    %170 = vmatpush1.msra.mxu0 0.0
    %171 = vmatprep.subr.mxu0 0.0
    %172 = vmatpush1.msra.mxu0 0.0
    %173 = vmatprep.subr.mxu0 0.0
    %174 = vmatpush1.msra.mxu0 0.0
    %175 = vmatprep.subr.mxu0 0.0
    %176 = vmatpush1.msra.mxu0 0.0
    %177 = vmatprep.subr.mxu0 0.0
    %178 = vmatpush1.msra.mxu0 0.0
    %179 = vmatprep.subr.mxu0 0.0
    %180 = vmatpush1.msra.mxu0 0.0
    %181 = vmatprep.subr.mxu0 0.0
    %182 = vmatpush1.msra.mxu0 0.0
    %183 = vmatprep.subr.mxu0 0.0
    %184 = vmatpush1.msra.mxu0 0.0
    %185 = vmatprep.subr.mxu0 0.0
    %186 = vmatpush1.msra.mxu0 0.0
    %187 = vmatprep.subr.mxu0 0.0
    %188 = vmatpush1.msra.mxu0 0.0
    %189 = vmatprep.subr.mxu0 0.0
    %190 = vmatpush1.msra.mxu0 0.0
    %191 = vmatprep.subr.mxu0 0.0
    %192 = vmatpush1.msra.mxu0 0.0
    %193 = vmatprep.subr.mxu0 0.0
    %194 = vmatpush1.msra.mxu0 0.0
    %195 = vmatprep.subr.mxu0 0.0
    %196 = vmatpush1.msra.mxu0 0.0
    %197 = vmatprep.subr.mxu0 0.0
    %198 = vmatpush1.msra.mxu0 0.0
    %199 = vmatprep.subr.mxu0 0.0
    %200 = vmatpush1.msra.mxu0 0.0
    %201 = vmatprep.subr.mxu0 0.0
    %202 = vmatpush1.msra.mxu0 0.0
    %203 = vmatprep.subr.mxu0 0.0
    %204 = vmatpush1.msra.mxu0 0.0
    %205 = vmatprep.subr.mxu0 0.0
    %206 = vmatpush1.msra.mxu0 0.0
    %207 = vmatprep.subr.mxu0 0.0
    %208 = vmatpush1.msra.mxu0 0.0
    %209 = vmatprep.subr.mxu0 0.0
    %210 = vmatpush1.msra.mxu0 0.0
    %211 = vmatprep.subr.mxu0 0.0
    %212 = vmatpush1.msra.mxu0 0.0
    %213 = vmatprep.subr.mxu0 0.0
    %214 = vmatpush1.msra.mxu0 0.0
    %215 = vmatprep.subr.mxu0 0.0
    %216 = vmatpush1.msra.mxu0 0.0
    %217 = vmatprep.mubr.f32.mxu0 0.0
    %218 = vmatmul.mubr.f32.gmra.mrb[0].mxu0 %v136
    %v219 = vpop.f32.mrb[0].mxu0
    %v220 = vadd.f32 0.0, %v219
    %v221 = vpop.f32.mrb[0].mxu0
    %222 = vmatprep.mubr.f32.mxu0 0.0
    %223 = vmatmul.mubr.f32.gmra.mrb[0].mxu0 %v139
    %v224 = vpop.f32.mrb[0].mxu0
    %v225 = vadd.f32 0.0, %v224
    %v226 = vpop.f32.mrb[0].mxu0
    %227 = vmatprep.mubr.f32.mxu0 0.0
    %228 = vmatmul.mubr.f32.gmra.mrb[0].mxu0 %v142
    %v229 = vpop.f32.mrb[0].mxu0
    %v230 = vadd.f32 0.0, %v229
    %v231 = vpop.f32.mrb[0].mxu0
    %232 = vmatprep.mubr.f32.mxu0 0.0
    %233 = vmatmul.mubr.f32.gmra.mrb[0].mxu0 %v145
    %v234 = vpop.f32.mrb[0].mxu0
    %v235 = vadd.f32 0.0, %v234
    %v236 = vpop.f32.mrb[0].mxu0
    %237 = vmatprep.mubr.f32.mxu0 0.0
    %238 = vmatmul.mubr.f32.gmra.mrb[0].mxu0 %v148
    %v239 = vpop.f32.mrb[0].mxu0
    %v240 = vadd.f32 0.0, %v239
    %v241 = vpop.f32.mrb[0].mxu0
    %242 = vmatprep.mubr.f32.mxu0 0.0
    %243 = vmatmul.mubr.f32.gmra.mrb[0].mxu0 %v151
    %v244 = vpop.f32.mrb[0].mxu0
    %v245 = vadd.f32 0.0, %v244
    %v246 = vpop.f32.mrb[0].mxu0
    %247 = vdwg.mxu0
    %v248 = vlaneseq
    %v249 = vshrl.u32 %v248, 7
    %v250 = vsub.s32 2, %v249
    %v251 = vrot.slane %v91, %v250
    %v252 = vadd.f32 %v220, %v251
    %v253 = vadd.f32 %v225, %v251
    %v254 = vlaneseq
    %v255 = vshrl.u32 %v254, 7
    %v256 = vsub.s32 3, %v255
    %v257 = vrot.slane %v91, %v256
    %259 = vrot.lane.b32.xlu0 %v257, 32
    %v260 = vpop.permute.xlu0 %259
    %v262 = vadd.f32 %v230, %v260
    %v263 = vadd.f32 %v235, %v260
    %v264 = vadd.f32 %v240, %v260
    %v265 = vadd.f32 %v245, %v260
    %268 = vrot.lane.b32.xlu0 %v252, 120
    %v269 = vpop.permute.xlu0 %268
    %270 = vrot.lane.b32.xlu0 %v253, 120
    %v271 = vpop.permute.xlu0 %270
    %272 = vrot.lane.b32.xlu0 %v252, 112
    %v273 = vpop.permute.xlu0 %272
    %274 = vrot.lane.b32.xlu0 %v253, 112
    %v275 = vpop.permute.xlu0 %274
    %276 = vrot.lane.b32.xlu0 %v252, 104
    %v277 = vpop.permute.xlu0 %276
    %278 = vrot.lane.b32.xlu0 %v253, 104
    %v279 = vpop.permute.xlu0 %278
    %284 = vrot.lane.b32.xlu0 %v262, 120
    %v285 = vpop.permute.xlu0 %284
    %286 = vrot.lane.b32.xlu0 %v263, 120
    %v287 = vpop.permute.xlu0 %286
    %288 = vrot.lane.b32.xlu0 %v264, 120
    %v289 = vpop.permute.xlu0 %288
    %290 = vrot.lane.b32.xlu0 %v265, 120
    %v291 = vpop.permute.xlu0 %290
    %292 = vrot.lane.b32.xlu0 %v262, 112
    %v293 = vpop.permute.xlu0 %292
    %294 = vrot.lane.b32.xlu0 %v263, 112
    %v295 = vpop.permute.xlu0 %294
    %296 = vrot.lane.b32.xlu0 %v264, 112
    %v297 = vpop.permute.xlu0 %296
    %298 = vrot.lane.b32.xlu0 %v265, 112
    %v299 = vpop.permute.xlu0 %298
    %300 = vrot.lane.b32.xlu0 %v262, 104
    %v301 = vpop.permute.xlu0 %300
    %302 = vrot.lane.b32.xlu0 %v263, 104
    %v303 = vpop.permute.xlu0 %302
    %304 = vrot.lane.b32.xlu0 %v264, 104
    %v305 = vpop.permute.xlu0 %304
    %306 = vrot.lane.b32.xlu0 %v265, 104
    %v307 = vpop.permute.xlu0 %306
    %308 = vrot.lane.b32.xlu0 %v262, 96
    %v309 = vpop.permute.xlu0 %308
    %310 = vrot.lane.b32.xlu0 %v263, 96
    %v311 = vpop.permute.xlu0 %310
    %vm312 = vcmask 64512
    %v313 = vsel %vm312, %v252, 0
    %v315 = vsel %vm312, %v309, 0
    %v317 = vsel %vm312, %v311, 0
    %319 = vmatprep.subr.mxu0 0.0
    %320 = vmatpush1.xpose.msra.mxu0 %v315
    %321 = vmatprep.subr.mxu0 0.0
    %322 = vmatpush1.xpose.msra.mxu0 %v317
    %323 = vmatprep.subr.mxu0 0.0
    %324 = vmatpush1.xpose.msra.mxu0 0.0
    %325 = vmatprep.subr.mxu0 0.0
    %326 = vmatpush1.xpose.msra.mxu0 0.0
    %327 = vmatprep.subr.mxu0 0.0
    %328 = vmatpush1.xpose.msra.mxu0 0.0
    %329 = vmatprep.subr.mxu0 0.0
    %330 = vmatpush1.xpose.msra.mxu0 0.0
    %331 = vmatprep.subr.mxu0 0.0
    %332 = vmatpush1.xpose.msra.mxu0 0.0
    %333 = vmatprep.subr.mxu0 0.0
    %334 = vmatpush1.xpose.msra.mxu0 0.0
    %335 = vmatprep.subr.mxu0 0.0
    %336 = vmatpush1.xpose.msra.mxu0 0.0
    %337 = vmatprep.subr.mxu0 0.0
    %338 = vmatpush1.xpose.msra.mxu0 0.0
    %339 = vmatprep.subr.mxu0 0.0
    %340 = vmatpush1.xpose.msra.mxu0 0.0
    %341 = vmatprep.subr.mxu0 0.0
    %342 = vmatpush1.xpose.msra.mxu0 0.0
    %343 = vmatprep.subr.mxu0 0.0
    %344 = vmatpush1.xpose.msra.mxu0 0.0
    %345 = vmatprep.subr.mxu0 0.0
    %346 = vmatpush1.xpose.msra.mxu0 0.0
    %347 = vmatprep.subr.mxu0 0.0
    %348 = vmatpush1.xpose.msra.mxu0 0.0
    %349 = vmatprep.subr.mxu0 0.0
    %350 = vmatpush1.xpose.msra.mxu0 0.0
    %351 = vmatprep.subr.mxu0 0.0
    %352 = vmatpush1.xpose.msra.mxu0 0.0
    %353 = vmatprep.subr.mxu0 0.0
    %354 = vmatpush1.xpose.msra.mxu0 0.0
    %355 = vmatprep.subr.mxu0 0.0
    %356 = vmatpush1.xpose.msra.mxu0 0.0
    %357 = vmatprep.subr.mxu0 0.0
    %358 = vmatpush1.xpose.msra.mxu0 0.0
    %359 = vmatprep.subr.mxu0 0.0
    %360 = vmatpush1.xpose.msra.mxu0 0.0
    %361 = vmatprep.subr.mxu0 0.0
    %362 = vmatpush1.xpose.msra.mxu0 0.0
    %363 = vmatprep.subr.mxu0 0.0
    %364 = vmatpush1.xpose.msra.mxu0 0.0
    %365 = vmatprep.subr.mxu0 0.0
    %366 = vmatpush1.xpose.msra.mxu0 0.0
    %367 = vmatprep.subr.mxu0 0.0
    %368 = vmatpush1.xpose.msra.mxu0 0.0
    %369 = vmatprep.subr.mxu0 0.0
    %370 = vmatpush1.xpose.msra.mxu0 0.0
    %371 = vmatprep.subr.mxu0 0.0
    %372 = vmatpush1.xpose.msra.mxu0 0.0
    %373 = vmatprep.subr.mxu0 0.0
    %374 = vmatpush1.xpose.msra.mxu0 0.0
    %375 = vmatprep.subr.mxu0 0.0
    %376 = vmatpush1.xpose.msra.mxu0 0.0
    %377 = vmatprep.subr.mxu0 0.0
    %378 = vmatpush1.xpose.msra.mxu0 0.0
    %379 = vmatprep.subr.mxu0 0.0
    %380 = vmatpush1.xpose.msra.mxu0 0.0
    %381 = vmatprep.subr.mxu0 0.0
    %382 = vmatpush1.xpose.msra.mxu0 0.0
    %383 = vmatprep.mubr.f32.mxu0 0.0
    %384 = vmatmul.mubr.f32.gmra.mrb[0].mxu0 %v313
    %v385 = vpop.f32.mrb[0].mxu0
    %v386 = vadd.f32 0.0, %v385
    %v387 = vpop.f32.mrb[0].mxu0
    %388 = vdwg.mxu0
    %389 = vrot.lane.b32.xlu0 %v264, 96
    %v390 = vpop.permute.xlu0 %389
    %391 = vrot.lane.b32.xlu0 %v265, 96
    %v392 = vpop.permute.xlu0 %391
    %v393 = vsel %vm312, %v253, 0
    %v395 = vsel %vm312, %v390, 0
    %v397 = vsel %vm312, %v392, 0
    %399 = vmatprep.subr.mxu0 0.0
    %400 = vmatpush1.xpose.msra.mxu0 %v395
    %401 = vmatprep.subr.mxu0 0.0
    %402 = vmatpush1.xpose.msra.mxu0 %v397
    %403 = vmatprep.subr.mxu0 0.0
    %404 = vmatpush1.xpose.msra.mxu0 0.0
    %405 = vmatprep.subr.mxu0 0.0
    %406 = vmatpush1.xpose.msra.mxu0 0.0
    %407 = vmatprep.subr.mxu0 0.0
    %408 = vmatpush1.xpose.msra.mxu0 0.0
    %409 = vmatprep.subr.mxu0 0.0
    %410 = vmatpush1.xpose.msra.mxu0 0.0
    %411 = vmatprep.subr.mxu0 0.0
    %412 = vmatpush1.xpose.msra.mxu0 0.0
    %413 = vmatprep.subr.mxu0 0.0
    %414 = vmatpush1.xpose.msra.mxu0 0.0
    %415 = vmatprep.subr.mxu0 0.0
    %416 = vmatpush1.xpose.msra.mxu0 0.0
    %417 = vmatprep.subr.mxu0 0.0
    %418 = vmatpush1.xpose.msra.mxu0 0.0
    %419 = vmatprep.subr.mxu0 0.0
    %420 = vmatpush1.xpose.msra.mxu0 0.0
    %421 = vmatprep.subr.mxu0 0.0
    %422 = vmatpush1.xpose.msra.mxu0 0.0
    %423 = vmatprep.subr.mxu0 0.0
    %424 = vmatpush1.xpose.msra.mxu0 0.0
    %425 = vmatprep.subr.mxu0 0.0
    %426 = vmatpush1.xpose.msra.mxu0 0.0
    %427 = vmatprep.subr.mxu0 0.0
    %428 = vmatpush1.xpose.msra.mxu0 0.0
    %429 = vmatprep.subr.mxu0 0.0
    %430 = vmatpush1.xpose.msra.mxu0 0.0
    %431 = vmatprep.subr.mxu0 0.0
    %432 = vmatpush1.xpose.msra.mxu0 0.0
    %433 = vmatprep.subr.mxu0 0.0
    %434 = vmatpush1.xpose.msra.mxu0 0.0
    %435 = vmatprep.subr.mxu0 0.0
    %436 = vmatpush1.xpose.msra.mxu0 0.0
    %437 = vmatprep.subr.mxu0 0.0
    %438 = vmatpush1.xpose.msra.mxu0 0.0
    %439 = vmatprep.subr.mxu0 0.0
    %440 = vmatpush1.xpose.msra.mxu0 0.0
    %441 = vmatprep.subr.mxu0 0.0
    %442 = vmatpush1.xpose.msra.mxu0 0.0
    %443 = vmatprep.subr.mxu0 0.0
    %444 = vmatpush1.xpose.msra.mxu0 0.0
    %445 = vmatprep.subr.mxu0 0.0
    %446 = vmatpush1.xpose.msra.mxu0 0.0
    %447 = vmatprep.subr.mxu0 0.0
    %448 = vmatpush1.xpose.msra.mxu0 0.0
    %449 = vmatprep.subr.mxu0 0.0
    %450 = vmatpush1.xpose.msra.mxu0 0.0
    %451 = vmatprep.subr.mxu0 0.0
    %452 = vmatpush1.xpose.msra.mxu0 0.0
    %453 = vmatprep.subr.mxu0 0.0
    %454 = vmatpush1.xpose.msra.mxu0 0.0
    %455 = vmatprep.subr.mxu0 0.0
    %456 = vmatpush1.xpose.msra.mxu0 0.0
    %457 = vmatprep.subr.mxu0 0.0
    %458 = vmatpush1.xpose.msra.mxu0 0.0
    %459 = vmatprep.subr.mxu0 0.0
    %460 = vmatpush1.xpose.msra.mxu0 0.0
    %461 = vmatprep.subr.mxu0 0.0
    %462 = vmatpush1.xpose.msra.mxu0 0.0
    %463 = vmatprep.mubr.f32.mxu0 0.0
    %464 = vmatmul.mubr.f32.gmra.mrb[0].mxu0 %v393
    %v465 = vpop.f32.mrb[0].mxu0
    %v466 = vadd.f32 0.0, %v465
    %v467 = vpop.f32.mrb[0].mxu0
    %468 = vdwg.mxu0
    %469 = vrot.lane.b32.xlu0 %v285, 96
    %v470 = vpop.permute.xlu0 %469
    %471 = vrot.lane.b32.xlu0 %v287, 96
    %v472 = vpop.permute.xlu0 %471
    %v473 = vsel %vm312, %v269, 0
    %v475 = vsel %vm312, %v470, 0
    %v477 = vsel %vm312, %v472, 0
    %479 = vmatprep.subr.mxu0 0.0
    %480 = vmatpush1.xpose.msra.mxu0 %v475
    %481 = vmatprep.subr.mxu0 0.0
    %482 = vmatpush1.xpose.msra.mxu0 %v477
    %483 = vmatprep.subr.mxu0 0.0
    %484 = vmatpush1.xpose.msra.mxu0 0.0
    %485 = vmatprep.subr.mxu0 0.0
    %486 = vmatpush1.xpose.msra.mxu0 0.0
    %487 = vmatprep.subr.mxu0 0.0
    %488 = vmatpush1.xpose.msra.mxu0 0.0
    %489 = vmatprep.subr.mxu0 0.0
    %490 = vmatpush1.xpose.msra.mxu0 0.0
    %491 = vmatprep.subr.mxu0 0.0
    %492 = vmatpush1.xpose.msra.mxu0 0.0
    %493 = vmatprep.subr.mxu0 0.0
    %494 = vmatpush1.xpose.msra.mxu0 0.0
    %495 = vmatprep.subr.mxu0 0.0
    %496 = vmatpush1.xpose.msra.mxu0 0.0
    %497 = vmatprep.subr.mxu0 0.0
    %498 = vmatpush1.xpose.msra.mxu0 0.0
    %499 = vmatprep.subr.mxu0 0.0
    %500 = vmatpush1.xpose.msra.mxu0 0.0
    %501 = vmatprep.subr.mxu0 0.0
    %502 = vmatpush1.xpose.msra.mxu0 0.0
    %503 = vmatprep.subr.mxu0 0.0
    %504 = vmatpush1.xpose.msra.mxu0 0.0
    %505 = vmatprep.subr.mxu0 0.0
    %506 = vmatpush1.xpose.msra.mxu0 0.0
    %507 = vmatprep.subr.mxu0 0.0
    %508 = vmatpush1.xpose.msra.mxu0 0.0
    %509 = vmatprep.subr.mxu0 0.0
    %510 = vmatpush1.xpose.msra.mxu0 0.0
    %511 = vmatprep.subr.mxu0 0.0
    %512 = vmatpush1.xpose.msra.mxu0 0.0
    %513 = vmatprep.subr.mxu0 0.0
    %514 = vmatpush1.xpose.msra.mxu0 0.0
    %515 = vmatprep.subr.mxu0 0.0
    %516 = vmatpush1.xpose.msra.mxu0 0.0
    %517 = vmatprep.subr.mxu0 0.0
    %518 = vmatpush1.xpose.msra.mxu0 0.0
    %519 = vmatprep.subr.mxu0 0.0
    %520 = vmatpush1.xpose.msra.mxu0 0.0
    %521 = vmatprep.subr.mxu0 0.0
    %522 = vmatpush1.xpose.msra.mxu0 0.0
    %523 = vmatprep.subr.mxu0 0.0
    %524 = vmatpush1.xpose.msra.mxu0 0.0
    %525 = vmatprep.subr.mxu0 0.0
    %526 = vmatpush1.xpose.msra.mxu0 0.0
    %527 = vmatprep.subr.mxu0 0.0
    %528 = vmatpush1.xpose.msra.mxu0 0.0
    %529 = vmatprep.subr.mxu0 0.0
    %530 = vmatpush1.xpose.msra.mxu0 0.0
    %531 = vmatprep.subr.mxu0 0.0
    %532 = vmatpush1.xpose.msra.mxu0 0.0
    %533 = vmatprep.subr.mxu0 0.0
    %534 = vmatpush1.xpose.msra.mxu0 0.0
    %535 = vmatprep.subr.mxu0 0.0
    %536 = vmatpush1.xpose.msra.mxu0 0.0
    %537 = vmatprep.subr.mxu0 0.0
    %538 = vmatpush1.xpose.msra.mxu0 0.0
    %539 = vmatprep.subr.mxu0 0.0
    %540 = vmatpush1.xpose.msra.mxu0 0.0
    %541 = vmatprep.subr.mxu0 0.0
    %542 = vmatpush1.xpose.msra.mxu0 0.0
    %543 = vmatprep.mubr.f32.mxu0 0.0
    %544 = vmatmul.mubr.f32.gmra.mrb[0].mxu0 %v473
    %v545 = vpop.f32.mrb[0].mxu0
    %v546 = vadd.f32 0.0, %v545
    %v547 = vpop.f32.mrb[0].mxu0
    %548 = vdwg.mxu0
    %549 = vrot.lane.b32.xlu0 %v289, 96
    %v550 = vpop.permute.xlu0 %549
    %551 = vrot.lane.b32.xlu0 %v291, 96
    %v552 = vpop.permute.xlu0 %551
    %v553 = vsel %vm312, %v271, 0
    %v555 = vsel %vm312, %v550, 0
    %v557 = vsel %vm312, %v552, 0
    %559 = vmatprep.subr.mxu0 0.0
    %560 = vmatpush1.xpose.msra.mxu0 %v555
    %561 = vmatprep.subr.mxu0 0.0
    %562 = vmatpush1.xpose.msra.mxu0 %v557
    %563 = vmatprep.subr.mxu0 0.0
    %564 = vmatpush1.xpose.msra.mxu0 0.0
    %565 = vmatprep.subr.mxu0 0.0
    %566 = vmatpush1.xpose.msra.mxu0 0.0
    %567 = vmatprep.subr.mxu0 0.0
    %568 = vmatpush1.xpose.msra.mxu0 0.0
    %569 = vmatprep.subr.mxu0 0.0
    %570 = vmatpush1.xpose.msra.mxu0 0.0
    %571 = vmatprep.subr.mxu0 0.0
    %572 = vmatpush1.xpose.msra.mxu0 0.0
    %573 = vmatprep.subr.mxu0 0.0
    %574 = vmatpush1.xpose.msra.mxu0 0.0
    %575 = vmatprep.subr.mxu0 0.0
    %576 = vmatpush1.xpose.msra.mxu0 0.0
    %577 = vmatprep.subr.mxu0 0.0
    %578 = vmatpush1.xpose.msra.mxu0 0.0
    %579 = vmatprep.subr.mxu0 0.0
    %580 = vmatpush1.xpose.msra.mxu0 0.0
    %581 = vmatprep.subr.mxu0 0.0
    %582 = vmatpush1.xpose.msra.mxu0 0.0
    %583 = vmatprep.subr.mxu0 0.0
    %584 = vmatpush1.xpose.msra.mxu0 0.0
    %585 = vmatprep.subr.mxu0 0.0
    %586 = vmatpush1.xpose.msra.mxu0 0.0
    %587 = vmatprep.subr.mxu0 0.0
    %588 = vmatpush1.xpose.msra.mxu0 0.0
    %589 = vmatprep.subr.mxu0 0.0
    %590 = vmatpush1.xpose.msra.mxu0 0.0
    %591 = vmatprep.subr.mxu0 0.0
    %592 = vmatpush1.xpose.msra.mxu0 0.0
    %593 = vmatprep.subr.mxu0 0.0
    %594 = vmatpush1.xpose.msra.mxu0 0.0
    %595 = vmatprep.subr.mxu0 0.0
    %596 = vmatpush1.xpose.msra.mxu0 0.0
    %597 = vmatprep.subr.mxu0 0.0
    %598 = vmatpush1.xpose.msra.mxu0 0.0
    %599 = vmatprep.subr.mxu0 0.0
    %600 = vmatpush1.xpose.msra.mxu0 0.0
    %601 = vmatprep.subr.mxu0 0.0
    %602 = vmatpush1.xpose.msra.mxu0 0.0
    %603 = vmatprep.subr.mxu0 0.0
    %604 = vmatpush1.xpose.msra.mxu0 0.0
    %605 = vmatprep.subr.mxu0 0.0
    %606 = vmatpush1.xpose.msra.mxu0 0.0
    %607 = vmatprep.subr.mxu0 0.0
    %608 = vmatpush1.xpose.msra.mxu0 0.0
    %609 = vmatprep.subr.mxu0 0.0
    %610 = vmatpush1.xpose.msra.mxu0 0.0
    %611 = vmatprep.subr.mxu0 0.0
    %612 = vmatpush1.xpose.msra.mxu0 0.0
    %613 = vmatprep.subr.mxu0 0.0
    %614 = vmatpush1.xpose.msra.mxu0 0.0
    %615 = vmatprep.subr.mxu0 0.0
    %616 = vmatpush1.xpose.msra.mxu0 0.0
    %617 = vmatprep.subr.mxu0 0.0
    %618 = vmatpush1.xpose.msra.mxu0 0.0
    %619 = vmatprep.subr.mxu0 0.0
    %620 = vmatpush1.xpose.msra.mxu0 0.0
    %621 = vmatprep.subr.mxu0 0.0
    %622 = vmatpush1.xpose.msra.mxu0 0.0
    %623 = vmatprep.mubr.f32.mxu0 0.0
    %624 = vmatmul.mubr.f32.gmra.mrb[0].mxu0 %v553
    %v625 = vpop.f32.mrb[0].mxu0
    %v626 = vadd.f32 0.0, %v625
    %v627 = vpop.f32.mrb[0].mxu0
    %628 = vdwg.mxu0
    %629 = vrot.lane.b32.xlu0 %v293, 96
    %v630 = vpop.permute.xlu0 %629
    %631 = vrot.lane.b32.xlu0 %v295, 96
    %v632 = vpop.permute.xlu0 %631
    %v633 = vsel %vm312, %v273, 0
    %v635 = vsel %vm312, %v630, 0
    %v637 = vsel %vm312, %v632, 0
    %639 = vmatprep.subr.mxu0 0.0
    %640 = vmatpush1.xpose.msra.mxu0 %v635
    %641 = vmatprep.subr.mxu0 0.0
    %642 = vmatpush1.xpose.msra.mxu0 %v637
    %643 = vmatprep.subr.mxu0 0.0
    %644 = vmatpush1.xpose.msra.mxu0 0.0
    %645 = vmatprep.subr.mxu0 0.0
    %646 = vmatpush1.xpose.msra.mxu0 0.0
    %647 = vmatprep.subr.mxu0 0.0
    %648 = vmatpush1.xpose.msra.mxu0 0.0
    %649 = vmatprep.subr.mxu0 0.0
    %650 = vmatpush1.xpose.msra.mxu0 0.0
    %651 = vmatprep.subr.mxu0 0.0
    %652 = vmatpush1.xpose.msra.mxu0 0.0
    %653 = vmatprep.subr.mxu0 0.0
    %654 = vmatpush1.xpose.msra.mxu0 0.0
    %655 = vmatprep.subr.mxu0 0.0
    %656 = vmatpush1.xpose.msra.mxu0 0.0
    %657 = vmatprep.subr.mxu0 0.0
    %658 = vmatpush1.xpose.msra.mxu0 0.0
    %659 = vmatprep.subr.mxu0 0.0
    %660 = vmatpush1.xpose.msra.mxu0 0.0
    %661 = vmatprep.subr.mxu0 0.0
    %662 = vmatpush1.xpose.msra.mxu0 0.0
    %663 = vmatprep.subr.mxu0 0.0
    %664 = vmatpush1.xpose.msra.mxu0 0.0
    %665 = vmatprep.subr.mxu0 0.0
    %666 = vmatpush1.xpose.msra.mxu0 0.0
    %667 = vmatprep.subr.mxu0 0.0
    %668 = vmatpush1.xpose.msra.mxu0 0.0
    %669 = vmatprep.subr.mxu0 0.0
    %670 = vmatpush1.xpose.msra.mxu0 0.0
    %671 = vmatprep.subr.mxu0 0.0
    %672 = vmatpush1.xpose.msra.mxu0 0.0
    %673 = vmatprep.subr.mxu0 0.0
    %674 = vmatpush1.xpose.msra.mxu0 0.0
    %675 = vmatprep.subr.mxu0 0.0
    %676 = vmatpush1.xpose.msra.mxu0 0.0
    %677 = vmatprep.subr.mxu0 0.0
    %678 = vmatpush1.xpose.msra.mxu0 0.0
    %679 = vmatprep.subr.mxu0 0.0
    %680 = vmatpush1.xpose.msra.mxu0 0.0
    %681 = vmatprep.subr.mxu0 0.0
    %682 = vmatpush1.xpose.msra.mxu0 0.0
    %683 = vmatprep.subr.mxu0 0.0
    %684 = vmatpush1.xpose.msra.mxu0 0.0
    %685 = vmatprep.subr.mxu0 0.0
    %686 = vmatpush1.xpose.msra.mxu0 0.0
    %687 = vmatprep.subr.mxu0 0.0
    %688 = vmatpush1.xpose.msra.mxu0 0.0
    %689 = vmatprep.subr.mxu0 0.0
    %690 = vmatpush1.xpose.msra.mxu0 0.0
    %691 = vmatprep.subr.mxu0 0.0
    %692 = vmatpush1.xpose.msra.mxu0 0.0
    %693 = vmatprep.subr.mxu0 0.0
    %694 = vmatpush1.xpose.msra.mxu0 0.0
    %695 = vmatprep.subr.mxu0 0.0
    %696 = vmatpush1.xpose.msra.mxu0 0.0
    %697 = vmatprep.subr.mxu0 0.0
    %698 = vmatpush1.xpose.msra.mxu0 0.0
    %699 = vmatprep.subr.mxu0 0.0
    %700 = vmatpush1.xpose.msra.mxu0 0.0
    %701 = vmatprep.subr.mxu0 0.0
    %702 = vmatpush1.xpose.msra.mxu0 0.0
    %703 = vmatprep.mubr.f32.mxu0 0.0
    %704 = vmatmul.mubr.f32.gmra.mrb[0].mxu0 %v633
    %v705 = vpop.f32.mrb[0].mxu0
    %v706 = vadd.f32 0.0, %v705
    %v707 = vpop.f32.mrb[0].mxu0
    %708 = vdwg.mxu0
    %709 = vrot.lane.b32.xlu0 %v297, 96
    %v710 = vpop.permute.xlu0 %709
    %711 = vrot.lane.b32.xlu0 %v299, 96
    %v712 = vpop.permute.xlu0 %711
    %v713 = vsel %vm312, %v275, 0
    %v715 = vsel %vm312, %v710, 0
    %v717 = vsel %vm312, %v712, 0
    %719 = vmatprep.subr.mxu0 0.0
    %720 = vmatpush1.xpose.msra.mxu0 %v715
    %721 = vmatprep.subr.mxu0 0.0
    %722 = vmatpush1.xpose.msra.mxu0 %v717
    %723 = vmatprep.subr.mxu0 0.0
    %724 = vmatpush1.xpose.msra.mxu0 0.0
    %725 = vmatprep.subr.mxu0 0.0
    %726 = vmatpush1.xpose.msra.mxu0 0.0
    %727 = vmatprep.subr.mxu0 0.0
    %728 = vmatpush1.xpose.msra.mxu0 0.0
    %729 = vmatprep.subr.mxu0 0.0
    %730 = vmatpush1.xpose.msra.mxu0 0.0
    %731 = vmatprep.subr.mxu0 0.0
    %732 = vmatpush1.xpose.msra.mxu0 0.0
    %733 = vmatprep.subr.mxu0 0.0
    %734 = vmatpush1.xpose.msra.mxu0 0.0
    %735 = vmatprep.subr.mxu0 0.0
    %736 = vmatpush1.xpose.msra.mxu0 0.0
    %737 = vmatprep.subr.mxu0 0.0
    %738 = vmatpush1.xpose.msra.mxu0 0.0
    %739 = vmatprep.subr.mxu0 0.0
    %740 = vmatpush1.xpose.msra.mxu0 0.0
    %741 = vmatprep.subr.mxu0 0.0
    %742 = vmatpush1.xpose.msra.mxu0 0.0
    %743 = vmatprep.subr.mxu0 0.0
    %744 = vmatpush1.xpose.msra.mxu0 0.0
    %745 = vmatprep.subr.mxu0 0.0
    %746 = vmatpush1.xpose.msra.mxu0 0.0
    %747 = vmatprep.subr.mxu0 0.0
    %748 = vmatpush1.xpose.msra.mxu0 0.0
    %749 = vmatprep.subr.mxu0 0.0
    %750 = vmatpush1.xpose.msra.mxu0 0.0
    %751 = vmatprep.subr.mxu0 0.0
    %752 = vmatpush1.xpose.msra.mxu0 0.0
    %753 = vmatprep.subr.mxu0 0.0
    %754 = vmatpush1.xpose.msra.mxu0 0.0
    %755 = vmatprep.subr.mxu0 0.0
    %756 = vmatpush1.xpose.msra.mxu0 0.0
    %757 = vmatprep.subr.mxu0 0.0
    %758 = vmatpush1.xpose.msra.mxu0 0.0
    %759 = vmatprep.subr.mxu0 0.0
    %760 = vmatpush1.xpose.msra.mxu0 0.0
    %761 = vmatprep.subr.mxu0 0.0
    %762 = vmatpush1.xpose.msra.mxu0 0.0
    %763 = vmatprep.subr.mxu0 0.0
    %764 = vmatpush1.xpose.msra.mxu0 0.0
    %765 = vmatprep.subr.mxu0 0.0
    %766 = vmatpush1.xpose.msra.mxu0 0.0
    %767 = vmatprep.subr.mxu0 0.0
    %768 = vmatpush1.xpose.msra.mxu0 0.0
    %769 = vmatprep.subr.mxu0 0.0
    %770 = vmatpush1.xpose.msra.mxu0 0.0
    %771 = vmatprep.subr.mxu0 0.0
    %772 = vmatpush1.xpose.msra.mxu0 0.0
    %773 = vmatprep.subr.mxu0 0.0
    %774 = vmatpush1.xpose.msra.mxu0 0.0
    %775 = vmatprep.subr.mxu0 0.0
    %776 = vmatpush1.xpose.msra.mxu0 0.0
    %777 = vmatprep.subr.mxu0 0.0
    %778 = vmatpush1.xpose.msra.mxu0 0.0
    %779 = vmatprep.subr.mxu0 0.0
    %780 = vmatpush1.xpose.msra.mxu0 0.0
    %781 = vmatprep.subr.mxu0 0.0
    %782 = vmatpush1.xpose.msra.mxu0 0.0
    %783 = vmatprep.mubr.f32.mxu0 0.0
    %784 = vmatmul.mubr.f32.gmra.mrb[0].mxu0 %v713
    %v785 = vpop.f32.mrb[0].mxu0
    %v786 = vadd.f32 0.0, %v785
    %v787 = vpop.f32.mrb[0].mxu0
    %788 = vdwg.mxu0
    %789 = vrot.lane.b32.xlu0 %v301, 96
    %v790 = vpop.permute.xlu0 %789
    %791 = vrot.lane.b32.xlu0 %v303, 96
    %v792 = vpop.permute.xlu0 %791
    %v793 = vsel %vm312, %v277, 0
    %v795 = vsel %vm312, %v790, 0
    %v797 = vsel %vm312, %v792, 0
    %799 = vmatprep.subr.mxu0 0.0
    %800 = vmatpush1.xpose.msra.mxu0 %v795
    %801 = vmatprep.subr.mxu0 0.0
    %802 = vmatpush1.xpose.msra.mxu0 %v797
    %803 = vmatprep.subr.mxu0 0.0
    %804 = vmatpush1.xpose.msra.mxu0 0.0
    %805 = vmatprep.subr.mxu0 0.0
    %806 = vmatpush1.xpose.msra.mxu0 0.0
    %807 = vmatprep.subr.mxu0 0.0
    %808 = vmatpush1.xpose.msra.mxu0 0.0
    %809 = vmatprep.subr.mxu0 0.0
    %810 = vmatpush1.xpose.msra.mxu0 0.0
    %811 = vmatprep.subr.mxu0 0.0
    %812 = vmatpush1.xpose.msra.mxu0 0.0
    %813 = vmatprep.subr.mxu0 0.0
    %814 = vmatpush1.xpose.msra.mxu0 0.0
    %815 = vmatprep.subr.mxu0 0.0
    %816 = vmatpush1.xpose.msra.mxu0 0.0
    %817 = vmatprep.subr.mxu0 0.0
    %818 = vmatpush1.xpose.msra.mxu0 0.0
    %819 = vmatprep.subr.mxu0 0.0
    %820 = vmatpush1.xpose.msra.mxu0 0.0
    %821 = vmatprep.subr.mxu0 0.0
    %822 = vmatpush1.xpose.msra.mxu0 0.0
    %823 = vmatprep.subr.mxu0 0.0
    %824 = vmatpush1.xpose.msra.mxu0 0.0
    %825 = vmatprep.subr.mxu0 0.0
    %826 = vmatpush1.xpose.msra.mxu0 0.0
    %827 = vmatprep.subr.mxu0 0.0
    %828 = vmatpush1.xpose.msra.mxu0 0.0
    %829 = vmatprep.subr.mxu0 0.0
    %830 = vmatpush1.xpose.msra.mxu0 0.0
    %831 = vmatprep.subr.mxu0 0.0
    %832 = vmatpush1.xpose.msra.mxu0 0.0
    %833 = vmatprep.subr.mxu0 0.0
    %834 = vmatpush1.xpose.msra.mxu0 0.0
    %835 = vmatprep.subr.mxu0 0.0
    %836 = vmatpush1.xpose.msra.mxu0 0.0
    %837 = vmatprep.subr.mxu0 0.0
    %838 = vmatpush1.xpose.msra.mxu0 0.0
    %839 = vmatprep.subr.mxu0 0.0
    %840 = vmatpush1.xpose.msra.mxu0 0.0
    %841 = vmatprep.subr.mxu0 0.0
    %842 = vmatpush1.xpose.msra.mxu0 0.0
    %843 = vmatprep.subr.mxu0 0.0
    %844 = vmatpush1.xpose.msra.mxu0 0.0
    %845 = vmatprep.subr.mxu0 0.0
    %846 = vmatpush1.xpose.msra.mxu0 0.0
    %847 = vmatprep.subr.mxu0 0.0
    %848 = vmatpush1.xpose.msra.mxu0 0.0
    %849 = vmatprep.subr.mxu0 0.0
    %850 = vmatpush1.xpose.msra.mxu0 0.0
    %851 = vmatprep.subr.mxu0 0.0
    %852 = vmatpush1.xpose.msra.mxu0 0.0
    %853 = vmatprep.subr.mxu0 0.0
    %854 = vmatpush1.xpose.msra.mxu0 0.0
    %855 = vmatprep.subr.mxu0 0.0
    %856 = vmatpush1.xpose.msra.mxu0 0.0
    %857 = vmatprep.subr.mxu0 0.0
    %858 = vmatpush1.xpose.msra.mxu0 0.0
    %859 = vmatprep.subr.mxu0 0.0
    %860 = vmatpush1.xpose.msra.mxu0 0.0
    %861 = vmatprep.subr.mxu0 0.0
    %862 = vmatpush1.xpose.msra.mxu0 0.0
    %863 = vmatprep.mubr.f32.mxu0 0.0
    %864 = vmatmul.mubr.f32.gmra.mrb[0].mxu0 %v793
    %v865 = vpop.f32.mrb[0].mxu0
    %v866 = vadd.f32 0.0, %v865
    %v867 = vpop.f32.mrb[0].mxu0
    %868 = vdwg.mxu0
    %869 = vrot.lane.b32.xlu0 %v305, 96
    %v870 = vpop.permute.xlu0 %869
    %871 = vrot.lane.b32.xlu0 %v307, 96
    %v872 = vpop.permute.xlu0 %871
    %v873 = vsel %vm312, %v279, 0
    %v875 = vsel %vm312, %v870, 0
    %v877 = vsel %vm312, %v872, 0
    %879 = vmatprep.subr.mxu0 0.0
    %880 = vmatpush1.xpose.msra.mxu0 %v875
    %881 = vmatprep.subr.mxu0 0.0
    %882 = vmatpush1.xpose.msra.mxu0 %v877
    %883 = vmatprep.subr.mxu0 0.0
    %884 = vmatpush1.xpose.msra.mxu0 0.0
    %885 = vmatprep.subr.mxu0 0.0
    %886 = vmatpush1.xpose.msra.mxu0 0.0
    %887 = vmatprep.subr.mxu0 0.0
    %888 = vmatpush1.xpose.msra.mxu0 0.0
    %889 = vmatprep.subr.mxu0 0.0
    %890 = vmatpush1.xpose.msra.mxu0 0.0
    %891 = vmatprep.subr.mxu0 0.0
    %892 = vmatpush1.xpose.msra.mxu0 0.0
    %893 = vmatprep.subr.mxu0 0.0
    %894 = vmatpush1.xpose.msra.mxu0 0.0
    %895 = vmatprep.subr.mxu0 0.0
    %896 = vmatpush1.xpose.msra.mxu0 0.0
    %897 = vmatprep.subr.mxu0 0.0
    %898 = vmatpush1.xpose.msra.mxu0 0.0
    %899 = vmatprep.subr.mxu0 0.0
    %900 = vmatpush1.xpose.msra.mxu0 0.0
    %901 = vmatprep.subr.mxu0 0.0
    %902 = vmatpush1.xpose.msra.mxu0 0.0
    %903 = vmatprep.subr.mxu0 0.0
    %904 = vmatpush1.xpose.msra.mxu0 0.0
    %905 = vmatprep.subr.mxu0 0.0
    %906 = vmatpush1.xpose.msra.mxu0 0.0
    %907 = vmatprep.subr.mxu0 0.0
    %908 = vmatpush1.xpose.msra.mxu0 0.0
    %909 = vmatprep.subr.mxu0 0.0
    %910 = vmatpush1.xpose.msra.mxu0 0.0
    %911 = vmatprep.subr.mxu0 0.0
    %912 = vmatpush1.xpose.msra.mxu0 0.0
    %913 = vmatprep.subr.mxu0 0.0
    %914 = vmatpush1.xpose.msra.mxu0 0.0
    %915 = vmatprep.subr.mxu0 0.0
    %916 = vmatpush1.xpose.msra.mxu0 0.0
    %917 = vmatprep.subr.mxu0 0.0
    %918 = vmatpush1.xpose.msra.mxu0 0.0
    %919 = vmatprep.subr.mxu0 0.0
    %920 = vmatpush1.xpose.msra.mxu0 0.0
    %921 = vmatprep.subr.mxu0 0.0
    %922 = vmatpush1.xpose.msra.mxu0 0.0
    %923 = vmatprep.subr.mxu0 0.0
    %924 = vmatpush1.xpose.msra.mxu0 0.0
    %925 = vmatprep.subr.mxu0 0.0
    %926 = vmatpush1.xpose.msra.mxu0 0.0
    %927 = vmatprep.subr.mxu0 0.0
    %928 = vmatpush1.xpose.msra.mxu0 0.0
    %929 = vmatprep.subr.mxu0 0.0
    %930 = vmatpush1.xpose.msra.mxu0 0.0
    %931 = vmatprep.subr.mxu0 0.0
    %932 = vmatpush1.xpose.msra.mxu0 0.0
    %933 = vmatprep.subr.mxu0 0.0
    %934 = vmatpush1.xpose.msra.mxu0 0.0
    %935 = vmatprep.subr.mxu0 0.0
    %936 = vmatpush1.xpose.msra.mxu0 0.0
    %937 = vmatprep.subr.mxu0 0.0
    %938 = vmatpush1.xpose.msra.mxu0 0.0
    %939 = vmatprep.subr.mxu0 0.0
    %940 = vmatpush1.xpose.msra.mxu0 0.0
    %941 = vmatprep.subr.mxu0 0.0
    %942 = vmatpush1.xpose.msra.mxu0 0.0
    %943 = vmatprep.mubr.f32.mxu0 0.0
    %944 = vmatmul.mubr.f32.gmra.mrb[0].mxu0 %v873
    %v945 = vpop.f32.mrb[0].mxu0
    %v946 = vadd.f32 0.0, %v945
    %v947 = vpop.f32.mrb[0].mxu0
    %948 = vdwg.mxu0
    %vm949 = vcmask 130048
    %v950 = vsel %vm949, %v386, -inf
    %951 = vmax.xlane.f32.xlu0 %v950
    %v952 = vpop.xlane.xlu0 %951
    %v953 = vsel %vm949, %v466, -inf
    %954 = vmax.xlane.f32.xlu0 %v953
    %v955 = vpop.xlane.xlu0 %954
    %v956 = vsel %vm949, %v546, -inf
    %957 = vmax.xlane.f32.xlu0 %v956
    %v958 = vpop.xlane.xlu0 %957
    %v959 = vsel %vm949, %v626, -inf
    %960 = vmax.xlane.f32.xlu0 %v959
    %v961 = vpop.xlane.xlu0 %960
    %v962 = vsel %vm949, %v706, -inf
    %963 = vmax.xlane.f32.xlu0 %v962
    %v964 = vpop.xlane.xlu0 %963
    %v965 = vsel %vm949, %v786, -inf
    %966 = vmax.xlane.f32.xlu0 %v965
    %v967 = vpop.xlane.xlu0 %966
    %v968 = vsel %vm949, %v866, -inf
    %969 = vmax.xlane.f32.xlu0 %v968
    %v970 = vpop.xlane.xlu0 %969
    %v971 = vsel %vm949, %v946, -inf
    %972 = vmax.xlane.f32.xlu0 %v971
    %v973 = vpop.xlane.xlu0 %972
    %v974 = vsub.f32 %v386, %v952
    %v975 = vsub.f32 %v466, %v955
    %v976 = vsub.f32 %v546, %v958
    %v977 = vsub.f32 %v626, %v961
    %v978 = vsub.f32 %v706, %v964
    %v979 = vsub.f32 %v786, %v967
    %v980 = vsub.f32 %v866, %v970
    %v981 = vsub.f32 %v946, %v973
    %v982 = vmul.f32 %v974, 1.442695
    %v983 = vpow.pop %v982
    %v984 = vmul.f32 %v975, 1.442695
    %v985 = vpow.pop %v984
    %v986 = vmul.f32 %v976, 1.442695
    %v987 = vpow.pop %v986
    %v988 = vmul.f32 %v977, 1.442695
    %v989 = vpow.pop %v988
    %v990 = vmul.f32 %v978, 1.442695
    %v991 = vpow.pop %v990
    %v992 = vmul.f32 %v979, 1.442695
    %v993 = vpow.pop %v992
    %v994 = vmul.f32 %v980, 1.442695
    %v995 = vpow.pop %v994
    %v996 = vmul.f32 %v981, 1.442695
    %v997 = vpow.pop %v996
    %v998 = vsel %vm949, %v983, 0.0
    %999 = vadd.xlane.f32.xlu0 %v998
    %v1000 = vpop.xlane.xlu0 %999
    %v1001 = vsel %vm949, %v985, 0.0
    %1002 = vadd.xlane.f32.xlu0 %v1001
    %v1003 = vpop.xlane.xlu0 %1002
    %v1004 = vsel %vm949, %v987, 0.0
    %1005 = vadd.xlane.f32.xlu0 %v1004
    %v1006 = vpop.xlane.xlu0 %1005
    %v1007 = vsel %vm949, %v989, 0.0
    %1008 = vadd.xlane.f32.xlu0 %v1007
    %v1009 = vpop.xlane.xlu0 %1008
    %v1010 = vsel %vm949, %v991, 0.0
    %1011 = vadd.xlane.f32.xlu0 %v1010
    %v1012 = vpop.xlane.xlu0 %1011
    %v1013 = vsel %vm949, %v993, 0.0
    %1014 = vadd.xlane.f32.xlu0 %v1013
    %v1015 = vpop.xlane.xlu0 %1014
    %v1016 = vsel %vm949, %v995, 0.0
    %1017 = vadd.xlane.f32.xlu0 %v1016
    %v1018 = vpop.xlane.xlu0 %1017
    %v1019 = vsel %vm949, %v997, 0.0
    %1020 = vadd.xlane.f32.xlu0 %v1019
    %v1021 = vpop.xlane.xlu0 %1020
    %v1022 = vrcp.pop %v1000
    %v1023 = vmul.f32 %v983, %v1022
    %v1024 = vrcp.pop %v1003
    %v1025 = vmul.f32 %v985, %v1024
    %v1026 = vrcp.pop %v1006
    %v1027 = vmul.f32 %v987, %v1026
    %v1028 = vrcp.pop %v1009
    %v1029 = vmul.f32 %v989, %v1028
    %v1030 = vrcp.pop %v1012
    %v1031 = vmul.f32 %v991, %v1030
    %v1032 = vrcp.pop %v1015
    %v1033 = vmul.f32 %v993, %v1032
    %v1034 = vrcp.pop %v1018
    %v1035 = vmul.f32 %v995, %v1034
    %v1036 = vrcp.pop %v1021
    %v1037 = vmul.f32 %v997, %v1036
    %1038 = vrot.lane.b32.xlu0 %v262, 64
    %v1039 = vpop.permute.xlu0 %1038
    %1040 = vrot.lane.b32.xlu0 %v263, 64
    %v1041 = vpop.permute.xlu0 %1040
    %v1045 = vsel %vm949, %v1023, 0
    %1047 = vmatprep.subr.mxu0 0.0
    %1048 = vmatpush1.msra.mxu0 %v1039
    %1049 = vmatprep.subr.mxu0 0.0
    %1050 = vmatpush1.msra.mxu0 %v1041
    %1051 = vmatprep.subr.mxu0 0.0
    %1052 = vmatpush1.msra.mxu0 0.0
    %1053 = vmatprep.subr.mxu0 0.0
    %1054 = vmatpush1.msra.mxu0 0.0
    %1055 = vmatprep.subr.mxu0 0.0
    %1056 = vmatpush1.msra.mxu0 0.0
    %1057 = vmatprep.subr.mxu0 0.0
    %1058 = vmatpush1.msra.mxu0 0.0
    %1059 = vmatprep.subr.mxu0 0.0
    %1060 = vmatpush1.msra.mxu0 0.0
    %1061 = vmatprep.subr.mxu0 0.0
    %1062 = vmatpush1.msra.mxu0 0.0
    %1063 = vmatprep.subr.mxu0 0.0
    %1064 = vmatpush1.msra.mxu0 0.0
    %1065 = vmatprep.subr.mxu0 0.0
    %1066 = vmatpush1.msra.mxu0 0.0
    %1067 = vmatprep.subr.mxu0 0.0
    %1068 = vmatpush1.msra.mxu0 0.0
    %1069 = vmatprep.subr.mxu0 0.0
    %1070 = vmatpush1.msra.mxu0 0.0
    %1071 = vmatprep.subr.mxu0 0.0
    %1072 = vmatpush1.msra.mxu0 0.0
    %1073 = vmatprep.subr.mxu0 0.0
    %1074 = vmatpush1.msra.mxu0 0.0
    %1075 = vmatprep.subr.mxu0 0.0
    %1076 = vmatpush1.msra.mxu0 0.0
    %1077 = vmatprep.subr.mxu0 0.0
    %1078 = vmatpush1.msra.mxu0 0.0
    %1079 = vmatprep.subr.mxu0 0.0
    %1080 = vmatpush1.msra.mxu0 0.0
    %1081 = vmatprep.subr.mxu0 0.0
    %1082 = vmatpush1.msra.mxu0 0.0
    %1083 = vmatprep.subr.mxu0 0.0
    %1084 = vmatpush1.msra.mxu0 0.0
    %1085 = vmatprep.subr.mxu0 0.0
    %1086 = vmatpush1.msra.mxu0 0.0
    %1087 = vmatprep.subr.mxu0 0.0
    %1088 = vmatpush1.msra.mxu0 0.0
    %1089 = vmatprep.subr.mxu0 0.0
    %1090 = vmatpush1.msra.mxu0 0.0
    %1091 = vmatprep.subr.mxu0 0.0
    %1092 = vmatpush1.msra.mxu0 0.0
    %1093 = vmatprep.subr.mxu0 0.0
    %1094 = vmatpush1.msra.mxu0 0.0
    %1095 = vmatprep.subr.mxu0 0.0
    %1096 = vmatpush1.msra.mxu0 0.0
    %1097 = vmatprep.subr.mxu0 0.0
    %1098 = vmatpush1.msra.mxu0 0.0
    %1099 = vmatprep.subr.mxu0 0.0
    %1100 = vmatpush1.msra.mxu0 0.0
    %1101 = vmatprep.subr.mxu0 0.0
    %1102 = vmatpush1.msra.mxu0 0.0
    %1103 = vmatprep.subr.mxu0 0.0
    %1104 = vmatpush1.msra.mxu0 0.0
    %1105 = vmatprep.subr.mxu0 0.0
    %1106 = vmatpush1.msra.mxu0 0.0
    %1107 = vmatprep.subr.mxu0 0.0
    %1108 = vmatpush1.msra.mxu0 0.0
    %1109 = vmatprep.subr.mxu0 0.0
    %1110 = vmatpush1.msra.mxu0 0.0
    %1111 = vmatprep.mubr.f32.mxu0 0.0
    %1112 = vmatmul.mubr.f32.gmra.mrb[0].mxu0 %v1045
    %v1113 = vpop.f32.mrb[0].mxu0
    %v1114 = vadd.f32 0.0, %v1113
    %v1115 = vpop.f32.mrb[0].mxu0
    %1116 = vdwg.mxu0
    %1117 = vrot.lane.b32.xlu0 %v264, 64
    %v1118 = vpop.permute.xlu0 %1117
    %1119 = vrot.lane.b32.xlu0 %v265, 64
    %v1120 = vpop.permute.xlu0 %1119
    %v1124 = vsel %vm949, %v1025, 0
    %1126 = vmatprep.subr.mxu0 0.0
    %1127 = vmatpush1.msra.mxu0 %v1118
    %1128 = vmatprep.subr.mxu0 0.0
    %1129 = vmatpush1.msra.mxu0 %v1120
    %1130 = vmatprep.subr.mxu0 0.0
    %1131 = vmatpush1.msra.mxu0 0.0
    %1132 = vmatprep.subr.mxu0 0.0
    %1133 = vmatpush1.msra.mxu0 0.0
    %1134 = vmatprep.subr.mxu0 0.0
    %1135 = vmatpush1.msra.mxu0 0.0
    %1136 = vmatprep.subr.mxu0 0.0
    %1137 = vmatpush1.msra.mxu0 0.0
    %1138 = vmatprep.subr.mxu0 0.0
    %1139 = vmatpush1.msra.mxu0 0.0
    %1140 = vmatprep.subr.mxu0 0.0
    %1141 = vmatpush1.msra.mxu0 0.0
    %1142 = vmatprep.subr.mxu0 0.0
    %1143 = vmatpush1.msra.mxu0 0.0
    %1144 = vmatprep.subr.mxu0 0.0
    %1145 = vmatpush1.msra.mxu0 0.0
    %1146 = vmatprep.subr.mxu0 0.0
    %1147 = vmatpush1.msra.mxu0 0.0
    %1148 = vmatprep.subr.mxu0 0.0
    %1149 = vmatpush1.msra.mxu0 0.0
    %1150 = vmatprep.subr.mxu0 0.0
    %1151 = vmatpush1.msra.mxu0 0.0
    %1152 = vmatprep.subr.mxu0 0.0
    %1153 = vmatpush1.msra.mxu0 0.0
    %1154 = vmatprep.subr.mxu0 0.0
    %1155 = vmatpush1.msra.mxu0 0.0
    %1156 = vmatprep.subr.mxu0 0.0
    %1157 = vmatpush1.msra.mxu0 0.0
    %1158 = vmatprep.subr.mxu0 0.0
    %1159 = vmatpush1.msra.mxu0 0.0
    %1160 = vmatprep.subr.mxu0 0.0
    %1161 = vmatpush1.msra.mxu0 0.0
    %1162 = vmatprep.subr.mxu0 0.0
    %1163 = vmatpush1.msra.mxu0 0.0
    %1164 = vmatprep.subr.mxu0 0.0
    %1165 = vmatpush1.msra.mxu0 0.0
    %1166 = vmatprep.subr.mxu0 0.0
    %1167 = vmatpush1.msra.mxu0 0.0
    %1168 = vmatprep.subr.mxu0 0.0
    %1169 = vmatpush1.msra.mxu0 0.0
    %1170 = vmatprep.subr.mxu0 0.0
    %1171 = vmatpush1.msra.mxu0 0.0
    %1172 = vmatprep.subr.mxu0 0.0
    %1173 = vmatpush1.msra.mxu0 0.0
    %1174 = vmatprep.subr.mxu0 0.0
    %1175 = vmatpush1.msra.mxu0 0.0
    %1176 = vmatprep.subr.mxu0 0.0
    %1177 = vmatpush1.msra.mxu0 0.0
    %1178 = vmatprep.subr.mxu0 0.0
    %1179 = vmatpush1.msra.mxu0 0.0
    %1180 = vmatprep.subr.mxu0 0.0
    %1181 = vmatpush1.msra.mxu0 0.0
    %1182 = vmatprep.subr.mxu0 0.0
    %1183 = vmatpush1.msra.mxu0 0.0
    %1184 = vmatprep.subr.mxu0 0.0
    %1185 = vmatpush1.msra.mxu0 0.0
    %1186 = vmatprep.subr.mxu0 0.0
    %1187 = vmatpush1.msra.mxu0 0.0
    %1188 = vmatprep.subr.mxu0 0.0
    %1189 = vmatpush1.msra.mxu0 0.0
    %1190 = vmatprep.mubr.f32.mxu0 0.0
    %1191 = vmatmul.mubr.f32.gmra.mrb[0].mxu0 %v1124
    %v1192 = vpop.f32.mrb[0].mxu0
    %v1193 = vadd.f32 0.0, %v1192
    %v1194 = vpop.f32.mrb[0].mxu0
    %1195 = vdwg.mxu0
    %1196 = vrot.lane.b32.xlu0 %v285, 64
    %v1197 = vpop.permute.xlu0 %1196
    %1198 = vrot.lane.b32.xlu0 %v287, 64
    %v1199 = vpop.permute.xlu0 %1198
    %v1203 = vsel %vm949, %v1027, 0
    %1205 = vmatprep.subr.mxu0 0.0
    %1206 = vmatpush1.msra.mxu0 %v1197
    %1207 = vmatprep.subr.mxu0 0.0
    %1208 = vmatpush1.msra.mxu0 %v1199
    %1209 = vmatprep.subr.mxu0 0.0
    %1210 = vmatpush1.msra.mxu0 0.0
    %1211 = vmatprep.subr.mxu0 0.0
    %1212 = vmatpush1.msra.mxu0 0.0
    %1213 = vmatprep.subr.mxu0 0.0
    %1214 = vmatpush1.msra.mxu0 0.0
    %1215 = vmatprep.subr.mxu0 0.0
    %1216 = vmatpush1.msra.mxu0 0.0
    %1217 = vmatprep.subr.mxu0 0.0
    %1218 = vmatpush1.msra.mxu0 0.0
    %1219 = vmatprep.subr.mxu0 0.0
    %1220 = vmatpush1.msra.mxu0 0.0
    %1221 = vmatprep.subr.mxu0 0.0
    %1222 = vmatpush1.msra.mxu0 0.0
    %1223 = vmatprep.subr.mxu0 0.0
    %1224 = vmatpush1.msra.mxu0 0.0
    %1225 = vmatprep.subr.mxu0 0.0
    %1226 = vmatpush1.msra.mxu0 0.0
    %1227 = vmatprep.subr.mxu0 0.0
    %1228 = vmatpush1.msra.mxu0 0.0
    %1229 = vmatprep.subr.mxu0 0.0
    %1230 = vmatpush1.msra.mxu0 0.0
    %1231 = vmatprep.subr.mxu0 0.0
    %1232 = vmatpush1.msra.mxu0 0.0
    %1233 = vmatprep.subr.mxu0 0.0
    %1234 = vmatpush1.msra.mxu0 0.0
    %1235 = vmatprep.subr.mxu0 0.0
    %1236 = vmatpush1.msra.mxu0 0.0
    %1237 = vmatprep.subr.mxu0 0.0
    %1238 = vmatpush1.msra.mxu0 0.0
    %1239 = vmatprep.subr.mxu0 0.0
    %1240 = vmatpush1.msra.mxu0 0.0
    %1241 = vmatprep.subr.mxu0 0.0
    %1242 = vmatpush1.msra.mxu0 0.0
    %1243 = vmatprep.subr.mxu0 0.0
    %1244 = vmatpush1.msra.mxu0 0.0
    %1245 = vmatprep.subr.mxu0 0.0
    %1246 = vmatpush1.msra.mxu0 0.0
    %1247 = vmatprep.subr.mxu0 0.0
    %1248 = vmatpush1.msra.mxu0 0.0
    %1249 = vmatprep.subr.mxu0 0.0
    %1250 = vmatpush1.msra.mxu0 0.0
    %1251 = vmatprep.subr.mxu0 0.0
    %1252 = vmatpush1.msra.mxu0 0.0
    %1253 = vmatprep.subr.mxu0 0.0
    %1254 = vmatpush1.msra.mxu0 0.0
    %1255 = vmatprep.subr.mxu0 0.0
    %1256 = vmatpush1.msra.mxu0 0.0
    %1257 = vmatprep.subr.mxu0 0.0
    %1258 = vmatpush1.msra.mxu0 0.0
    %1259 = vmatprep.subr.mxu0 0.0
    %1260 = vmatpush1.msra.mxu0 0.0
    %1261 = vmatprep.subr.mxu0 0.0
    %1262 = vmatpush1.msra.mxu0 0.0
    %1263 = vmatprep.subr.mxu0 0.0
    %1264 = vmatpush1.msra.mxu0 0.0
    %1265 = vmatprep.subr.mxu0 0.0
    %1266 = vmatpush1.msra.mxu0 0.0
    %1267 = vmatprep.subr.mxu0 0.0
    %1268 = vmatpush1.msra.mxu0 0.0
    %1269 = vmatprep.mubr.f32.mxu0 0.0
    %1270 = vmatmul.mubr.f32.gmra.mrb[0].mxu0 %v1203
    %v1271 = vpop.f32.mrb[0].mxu0
    %v1272 = vadd.f32 0.0, %v1271
    %v1273 = vpop.f32.mrb[0].mxu0
    %1274 = vdwg.mxu0
    %1275 = vrot.lane.b32.xlu0 %v289, 64
    %v1276 = vpop.permute.xlu0 %1275
    %1277 = vrot.lane.b32.xlu0 %v291, 64
    %v1278 = vpop.permute.xlu0 %1277
    %v1282 = vsel %vm949, %v1029, 0
    %1284 = vmatprep.subr.mxu0 0.0
    %1285 = vmatpush1.msra.mxu0 %v1276
    %1286 = vmatprep.subr.mxu0 0.0
    %1287 = vmatpush1.msra.mxu0 %v1278
    %1288 = vmatprep.subr.mxu0 0.0
    %1289 = vmatpush1.msra.mxu0 0.0
    %1290 = vmatprep.subr.mxu0 0.0
    %1291 = vmatpush1.msra.mxu0 0.0
    %1292 = vmatprep.subr.mxu0 0.0
    %1293 = vmatpush1.msra.mxu0 0.0
    %1294 = vmatprep.subr.mxu0 0.0
    %1295 = vmatpush1.msra.mxu0 0.0
    %1296 = vmatprep.subr.mxu0 0.0
    %1297 = vmatpush1.msra.mxu0 0.0
    %1298 = vmatprep.subr.mxu0 0.0
    %1299 = vmatpush1.msra.mxu0 0.0
    %1300 = vmatprep.subr.mxu0 0.0
    %1301 = vmatpush1.msra.mxu0 0.0
    %1302 = vmatprep.subr.mxu0 0.0
    %1303 = vmatpush1.msra.mxu0 0.0
    %1304 = vmatprep.subr.mxu0 0.0
    %1305 = vmatpush1.msra.mxu0 0.0
    %1306 = vmatprep.subr.mxu0 0.0
    %1307 = vmatpush1.msra.mxu0 0.0
    %1308 = vmatprep.subr.mxu0 0.0
    %1309 = vmatpush1.msra.mxu0 0.0
    %1310 = vmatprep.subr.mxu0 0.0
    %1311 = vmatpush1.msra.mxu0 0.0
    %1312 = vmatprep.subr.mxu0 0.0
    %1313 = vmatpush1.msra.mxu0 0.0
    %1314 = vmatprep.subr.mxu0 0.0
    %1315 = vmatpush1.msra.mxu0 0.0
    %1316 = vmatprep.subr.mxu0 0.0
    %1317 = vmatpush1.msra.mxu0 0.0
    %1318 = vmatprep.subr.mxu0 0.0
    %1319 = vmatpush1.msra.mxu0 0.0
    %1320 = vmatprep.subr.mxu0 0.0
    %1321 = vmatpush1.msra.mxu0 0.0
    %1322 = vmatprep.subr.mxu0 0.0
    %1323 = vmatpush1.msra.mxu0 0.0
    %1324 = vmatprep.subr.mxu0 0.0
    %1325 = vmatpush1.msra.mxu0 0.0
    %1326 = vmatprep.subr.mxu0 0.0
    %1327 = vmatpush1.msra.mxu0 0.0
    %1328 = vmatprep.subr.mxu0 0.0
    %1329 = vmatpush1.msra.mxu0 0.0
    %1330 = vmatprep.subr.mxu0 0.0
    %1331 = vmatpush1.msra.mxu0 0.0
    %1332 = vmatprep.subr.mxu0 0.0
    %1333 = vmatpush1.msra.mxu0 0.0
    %1334 = vmatprep.subr.mxu0 0.0
    %1335 = vmatpush1.msra.mxu0 0.0
    %1336 = vmatprep.subr.mxu0 0.0
    %1337 = vmatpush1.msra.mxu0 0.0
    %1338 = vmatprep.subr.mxu0 0.0
    %1339 = vmatpush1.msra.mxu0 0.0
    %1340 = vmatprep.subr.mxu0 0.0
    %1341 = vmatpush1.msra.mxu0 0.0
    %1342 = vmatprep.subr.mxu0 0.0
    %1343 = vmatpush1.msra.mxu0 0.0
    %1344 = vmatprep.subr.mxu0 0.0
    %1345 = vmatpush1.msra.mxu0 0.0
    %1346 = vmatprep.subr.mxu0 0.0
    %1347 = vmatpush1.msra.mxu0 0.0
    %1348 = vmatprep.mubr.f32.mxu0 0.0
    %1349 = vmatmul.mubr.f32.gmra.mrb[0].mxu0 %v1282
    %v1350 = vpop.f32.mrb[0].mxu0
    %v1351 = vadd.f32 0.0, %v1350
    %v1352 = vpop.f32.mrb[0].mxu0
    %1353 = vdwg.mxu0
    %1354 = vrot.lane.b32.xlu0 %v293, 64
    %v1355 = vpop.permute.xlu0 %1354
    %1356 = vrot.lane.b32.xlu0 %v295, 64
    %v1357 = vpop.permute.xlu0 %1356
    %v1361 = vsel %vm949, %v1031, 0
    %1363 = vmatprep.subr.mxu0 0.0
    %1364 = vmatpush1.msra.mxu0 %v1355
    %1365 = vmatprep.subr.mxu0 0.0
    %1366 = vmatpush1.msra.mxu0 %v1357
    %1367 = vmatprep.subr.mxu0 0.0
    %1368 = vmatpush1.msra.mxu0 0.0
    %1369 = vmatprep.subr.mxu0 0.0
    %1370 = vmatpush1.msra.mxu0 0.0
    %1371 = vmatprep.subr.mxu0 0.0
    %1372 = vmatpush1.msra.mxu0 0.0
    %1373 = vmatprep.subr.mxu0 0.0
    %1374 = vmatpush1.msra.mxu0 0.0
    %1375 = vmatprep.subr.mxu0 0.0
    %1376 = vmatpush1.msra.mxu0 0.0
    %1377 = vmatprep.subr.mxu0 0.0
    %1378 = vmatpush1.msra.mxu0 0.0
    %1379 = vmatprep.subr.mxu0 0.0
    %1380 = vmatpush1.msra.mxu0 0.0
    %1381 = vmatprep.subr.mxu0 0.0
    %1382 = vmatpush1.msra.mxu0 0.0
    %1383 = vmatprep.subr.mxu0 0.0
    %1384 = vmatpush1.msra.mxu0 0.0
    %1385 = vmatprep.subr.mxu0 0.0
    %1386 = vmatpush1.msra.mxu0 0.0
    %1387 = vmatprep.subr.mxu0 0.0
    %1388 = vmatpush1.msra.mxu0 0.0
    %1389 = vmatprep.subr.mxu0 0.0
    %1390 = vmatpush1.msra.mxu0 0.0
    %1391 = vmatprep.subr.mxu0 0.0
    %1392 = vmatpush1.msra.mxu0 0.0
    %1393 = vmatprep.subr.mxu0 0.0
    %1394 = vmatpush1.msra.mxu0 0.0
    %1395 = vmatprep.subr.mxu0 0.0
    %1396 = vmatpush1.msra.mxu0 0.0
    %1397 = vmatprep.subr.mxu0 0.0
    %1398 = vmatpush1.msra.mxu0 0.0
    %1399 = vmatprep.subr.mxu0 0.0
    %1400 = vmatpush1.msra.mxu0 0.0
    %1401 = vmatprep.subr.mxu0 0.0
    %1402 = vmatpush1.msra.mxu0 0.0
    %1403 = vmatprep.subr.mxu0 0.0
    %1404 = vmatpush1.msra.mxu0 0.0
    %1405 = vmatprep.subr.mxu0 0.0
    %1406 = vmatpush1.msra.mxu0 0.0
    %1407 = vmatprep.subr.mxu0 0.0
    %1408 = vmatpush1.msra.mxu0 0.0
    %1409 = vmatprep.subr.mxu0 0.0
    %1410 = vmatpush1.msra.mxu0 0.0
    %1411 = vmatprep.subr.mxu0 0.0
    %1412 = vmatpush1.msra.mxu0 0.0
    %1413 = vmatprep.subr.mxu0 0.0
    %1414 = vmatpush1.msra.mxu0 0.0
    %1415 = vmatprep.subr.mxu0 0.0
    %1416 = vmatpush1.msra.mxu0 0.0
    %1417 = vmatprep.subr.mxu0 0.0
    %1418 = vmatpush1.msra.mxu0 0.0
    %1419 = vmatprep.subr.mxu0 0.0
    %1420 = vmatpush1.msra.mxu0 0.0
    %1421 = vmatprep.subr.mxu0 0.0
    %1422 = vmatpush1.msra.mxu0 0.0
    %1423 = vmatprep.subr.mxu0 0.0
    %1424 = vmatpush1.msra.mxu0 0.0
    %1425 = vmatprep.subr.mxu0 0.0
    %1426 = vmatpush1.msra.mxu0 0.0
    %1427 = vmatprep.mubr.f32.mxu0 0.0
    %1428 = vmatmul.mubr.f32.gmra.mrb[0].mxu0 %v1361
    %v1429 = vpop.f32.mrb[0].mxu0
    %v1430 = vadd.f32 0.0, %v1429
    %v1431 = vpop.f32.mrb[0].mxu0
    %1432 = vdwg.mxu0
    %1433 = vrot.lane.b32.xlu0 %v297, 64
    %v1434 = vpop.permute.xlu0 %1433
    %1435 = vrot.lane.b32.xlu0 %v299, 64
    %v1436 = vpop.permute.xlu0 %1435
    %v1440 = vsel %vm949, %v1033, 0
    %1442 = vmatprep.subr.mxu0 0.0
    %1443 = vmatpush1.msra.mxu0 %v1434
    %1444 = vmatprep.subr.mxu0 0.0
    %1445 = vmatpush1.msra.mxu0 %v1436
    %1446 = vmatprep.subr.mxu0 0.0
    %1447 = vmatpush1.msra.mxu0 0.0
    %1448 = vmatprep.subr.mxu0 0.0
    %1449 = vmatpush1.msra.mxu0 0.0
    %1450 = vmatprep.subr.mxu0 0.0
    %1451 = vmatpush1.msra.mxu0 0.0
    %1452 = vmatprep.subr.mxu0 0.0
    %1453 = vmatpush1.msra.mxu0 0.0
    %1454 = vmatprep.subr.mxu0 0.0
    %1455 = vmatpush1.msra.mxu0 0.0
    %1456 = vmatprep.subr.mxu0 0.0
    %1457 = vmatpush1.msra.mxu0 0.0
    %1458 = vmatprep.subr.mxu0 0.0
    %1459 = vmatpush1.msra.mxu0 0.0
    %1460 = vmatprep.subr.mxu0 0.0
    %1461 = vmatpush1.msra.mxu0 0.0
    %1462 = vmatprep.subr.mxu0 0.0
    %1463 = vmatpush1.msra.mxu0 0.0
    %1464 = vmatprep.subr.mxu0 0.0
    %1465 = vmatpush1.msra.mxu0 0.0
    %1466 = vmatprep.subr.mxu0 0.0
    %1467 = vmatpush1.msra.mxu0 0.0
    %1468 = vmatprep.subr.mxu0 0.0
    %1469 = vmatpush1.msra.mxu0 0.0
    %1470 = vmatprep.subr.mxu0 0.0
    %1471 = vmatpush1.msra.mxu0 0.0
    %1472 = vmatprep.subr.mxu0 0.0
    %1473 = vmatpush1.msra.mxu0 0.0
    %1474 = vmatprep.subr.mxu0 0.0
    %1475 = vmatpush1.msra.mxu0 0.0
    %1476 = vmatprep.subr.mxu0 0.0
    %1477 = vmatpush1.msra.mxu0 0.0
    %1478 = vmatprep.subr.mxu0 0.0
    %1479 = vmatpush1.msra.mxu0 0.0
    %1480 = vmatprep.subr.mxu0 0.0
    %1481 = vmatpush1.msra.mxu0 0.0
    %1482 = vmatprep.subr.mxu0 0.0
    %1483 = vmatpush1.msra.mxu0 0.0
    %1484 = vmatprep.subr.mxu0 0.0
    %1485 = vmatpush1.msra.mxu0 0.0
    %1486 = vmatprep.subr.mxu0 0.0
    %1487 = vmatpush1.msra.mxu0 0.0
    %1488 = vmatprep.subr.mxu0 0.0
    %1489 = vmatpush1.msra.mxu0 0.0
    %1490 = vmatprep.subr.mxu0 0.0
    %1491 = vmatpush1.msra.mxu0 0.0
    %1492 = vmatprep.subr.mxu0 0.0
    %1493 = vmatpush1.msra.mxu0 0.0
    %1494 = vmatprep.subr.mxu0 0.0
    %1495 = vmatpush1.msra.mxu0 0.0
    %1496 = vmatprep.subr.mxu0 0.0
    %1497 = vmatpush1.msra.mxu0 0.0
    %1498 = vmatprep.subr.mxu0 0.0
    %1499 = vmatpush1.msra.mxu0 0.0
    %1500 = vmatprep.subr.mxu0 0.0
    %1501 = vmatpush1.msra.mxu0 0.0
    %1502 = vmatprep.subr.mxu0 0.0
    %1503 = vmatpush1.msra.mxu0 0.0
    %1504 = vmatprep.subr.mxu0 0.0
    %1505 = vmatpush1.msra.mxu0 0.0
    %1506 = vmatprep.mubr.f32.mxu0 0.0
    %1507 = vmatmul.mubr.f32.gmra.mrb[0].mxu0 %v1440
    %v1508 = vpop.f32.mrb[0].mxu0
    %v1509 = vadd.f32 0.0, %v1508
    %v1510 = vpop.f32.mrb[0].mxu0
    %1511 = vdwg.mxu0
    %1512 = vrot.lane.b32.xlu0 %v301, 64
    %v1513 = vpop.permute.xlu0 %1512
    %1514 = vrot.lane.b32.xlu0 %v303, 64
    %v1515 = vpop.permute.xlu0 %1514
    %v1519 = vsel %vm949, %v1035, 0
    %1521 = vmatprep.subr.mxu0 0.0
    %1522 = vmatpush1.msra.mxu0 %v1513
    %1523 = vmatprep.subr.mxu0 0.0
    %1524 = vmatpush1.msra.mxu0 %v1515
    %1525 = vmatprep.subr.mxu0 0.0
    %1526 = vmatpush1.msra.mxu0 0.0
    %1527 = vmatprep.subr.mxu0 0.0
    %1528 = vmatpush1.msra.mxu0 0.0
    %1529 = vmatprep.subr.mxu0 0.0
    %1530 = vmatpush1.msra.mxu0 0.0
    %1531 = vmatprep.subr.mxu0 0.0
    %1532 = vmatpush1.msra.mxu0 0.0
    %1533 = vmatprep.subr.mxu0 0.0
    %1534 = vmatpush1.msra.mxu0 0.0
    %1535 = vmatprep.subr.mxu0 0.0
    %1536 = vmatpush1.msra.mxu0 0.0
    %1537 = vmatprep.subr.mxu0 0.0
    %1538 = vmatpush1.msra.mxu0 0.0
    %1539 = vmatprep.subr.mxu0 0.0
    %1540 = vmatpush1.msra.mxu0 0.0
    %1541 = vmatprep.subr.mxu0 0.0
    %1542 = vmatpush1.msra.mxu0 0.0
    %1543 = vmatprep.subr.mxu0 0.0
    %1544 = vmatpush1.msra.mxu0 0.0
    %1545 = vmatprep.subr.mxu0 0.0
    %1546 = vmatpush1.msra.mxu0 0.0
    %1547 = vmatprep.subr.mxu0 0.0
    %1548 = vmatpush1.msra.mxu0 0.0
    %1549 = vmatprep.subr.mxu0 0.0
    %1550 = vmatpush1.msra.mxu0 0.0
    %1551 = vmatprep.subr.mxu0 0.0
    %1552 = vmatpush1.msra.mxu0 0.0
    %1553 = vmatprep.subr.mxu0 0.0
    %1554 = vmatpush1.msra.mxu0 0.0
    %1555 = vmatprep.subr.mxu0 0.0
    %1556 = vmatpush1.msra.mxu0 0.0
    %1557 = vmatprep.subr.mxu0 0.0
    %1558 = vmatpush1.msra.mxu0 0.0
    %1559 = vmatprep.subr.mxu0 0.0
    %1560 = vmatpush1.msra.mxu0 0.0
    %1561 = vmatprep.subr.mxu0 0.0
    %1562 = vmatpush1.msra.mxu0 0.0
    %1563 = vmatprep.subr.mxu0 0.0
    %1564 = vmatpush1.msra.mxu0 0.0
    %1565 = vmatprep.subr.mxu0 0.0
    %1566 = vmatpush1.msra.mxu0 0.0
    %1567 = vmatprep.subr.mxu0 0.0
    %1568 = vmatpush1.msra.mxu0 0.0
    %1569 = vmatprep.subr.mxu0 0.0
    %1570 = vmatpush1.msra.mxu0 0.0
    %1571 = vmatprep.subr.mxu0 0.0
    %1572 = vmatpush1.msra.mxu0 0.0
    %1573 = vmatprep.subr.mxu0 0.0
    %1574 = vmatpush1.msra.mxu0 0.0
    %1575 = vmatprep.subr.mxu0 0.0
    %1576 = vmatpush1.msra.mxu0 0.0
    %1577 = vmatprep.subr.mxu0 0.0
    %1578 = vmatpush1.msra.mxu0 0.0
    %1579 = vmatprep.subr.mxu0 0.0
    %1580 = vmatpush1.msra.mxu0 0.0
    %1581 = vmatprep.subr.mxu0 0.0
    %1582 = vmatpush1.msra.mxu0 0.0
    %1583 = vmatprep.subr.mxu0 0.0
    %1584 = vmatpush1.msra.mxu0 0.0
    %1585 = vmatprep.mubr.f32.mxu0 0.0
    %1586 = vmatmul.mubr.f32.gmra.mrb[0].mxu0 %v1519
    %v1587 = vpop.f32.mrb[0].mxu0
    %v1588 = vadd.f32 0.0, %v1587
    %v1589 = vpop.f32.mrb[0].mxu0
    %1590 = vdwg.mxu0
    %1591 = vrot.lane.b32.xlu0 %v305, 64
    %v1592 = vpop.permute.xlu0 %1591
    %1593 = vrot.lane.b32.xlu0 %v307, 64
    %v1594 = vpop.permute.xlu0 %1593
    %v1598 = vsel %vm949, %v1037, 0
    %1600 = vmatprep.subr.mxu0 0.0
    %1601 = vmatpush1.msra.mxu0 %v1592
    %1602 = vmatprep.subr.mxu0 0.0
    %1603 = vmatpush1.msra.mxu0 %v1594
    %1604 = vmatprep.subr.mxu0 0.0
    %1605 = vmatpush1.msra.mxu0 0.0
    %1606 = vmatprep.subr.mxu0 0.0
    %1607 = vmatpush1.msra.mxu0 0.0
    %1608 = vmatprep.subr.mxu0 0.0
    %1609 = vmatpush1.msra.mxu0 0.0
    %1610 = vmatprep.subr.mxu0 0.0
    %1611 = vmatpush1.msra.mxu0 0.0
    %1612 = vmatprep.subr.mxu0 0.0
    %1613 = vmatpush1.msra.mxu0 0.0
    %1614 = vmatprep.subr.mxu0 0.0
    %1615 = vmatpush1.msra.mxu0 0.0
    %1616 = vmatprep.subr.mxu0 0.0
    %1617 = vmatpush1.msra.mxu0 0.0
    %1618 = vmatprep.subr.mxu0 0.0
    %1619 = vmatpush1.msra.mxu0 0.0
    %1620 = vmatprep.subr.mxu0 0.0
    %1621 = vmatpush1.msra.mxu0 0.0
    %1622 = vmatprep.subr.mxu0 0.0
    %1623 = vmatpush1.msra.mxu0 0.0
    %1624 = vmatprep.subr.mxu0 0.0
    %1625 = vmatpush1.msra.mxu0 0.0
    %1626 = vmatprep.subr.mxu0 0.0
    %1627 = vmatpush1.msra.mxu0 0.0
    %1628 = vmatprep.subr.mxu0 0.0
    %1629 = vmatpush1.msra.mxu0 0.0
    %1630 = vmatprep.subr.mxu0 0.0
    %1631 = vmatpush1.msra.mxu0 0.0
    %1632 = vmatprep.subr.mxu0 0.0
    %1633 = vmatpush1.msra.mxu0 0.0
    %1634 = vmatprep.subr.mxu0 0.0
    %1635 = vmatpush1.msra.mxu0 0.0
    %1636 = vmatprep.subr.mxu0 0.0
    %1637 = vmatpush1.msra.mxu0 0.0
    %1638 = vmatprep.subr.mxu0 0.0
    %1639 = vmatpush1.msra.mxu0 0.0
    %1640 = vmatprep.subr.mxu0 0.0
    %1641 = vmatpush1.msra.mxu0 0.0
    %1642 = vmatprep.subr.mxu0 0.0
    %1643 = vmatpush1.msra.mxu0 0.0
    %1644 = vmatprep.subr.mxu0 0.0
    %1645 = vmatpush1.msra.mxu0 0.0
    %1646 = vmatprep.subr.mxu0 0.0
    %1647 = vmatpush1.msra.mxu0 0.0
    %1648 = vmatprep.subr.mxu0 0.0
    %1649 = vmatpush1.msra.mxu0 0.0
    %1650 = vmatprep.subr.mxu0 0.0
    %1651 = vmatpush1.msra.mxu0 0.0
    %1652 = vmatprep.subr.mxu0 0.0
    %1653 = vmatpush1.msra.mxu0 0.0
    %1654 = vmatprep.subr.mxu0 0.0
    %1655 = vmatpush1.msra.mxu0 0.0
    %1656 = vmatprep.subr.mxu0 0.0
    %1657 = vmatpush1.msra.mxu0 0.0
    %1658 = vmatprep.subr.mxu0 0.0
    %1659 = vmatpush1.msra.mxu0 0.0
    %1660 = vmatprep.subr.mxu0 0.0
    %1661 = vmatpush1.msra.mxu0 0.0
    %1662 = vmatprep.subr.mxu0 0.0
    %1663 = vmatpush1.msra.mxu0 0.0
    %1664 = vmatprep.mubr.f32.mxu0 0.0
    %1665 = vmatmul.mubr.f32.gmra.mrb[0].mxu0 %v1598
    %v1666 = vpop.f32.mrb[0].mxu0
    %v1667 = vadd.f32 0.0, %v1666
    %v1668 = vpop.f32.mrb[0].mxu0
    %1669 = vdwg.mxu0
    %1672 = vrot.lane.b32.xlu0 %v1272, 8
    %v1673 = vpop.permute.xlu0 %1672
    %1674 = vrot.lane.b32.xlu0 %v1351, 8
    %v1675 = vpop.permute.xlu0 %1674
    %1680 = vrot.lane.b32.xlu0 %v1430, 16
    %v1681 = vpop.permute.xlu0 %1680
    %1682 = vrot.lane.b32.xlu0 %v1509, 16
    %v1683 = vpop.permute.xlu0 %1682
    %1688 = vrot.lane.b32.xlu0 %v1588, 24
    %v1689 = vpop.permute.xlu0 %1688
    %1690 = vrot.lane.b32.xlu0 %v1667, 24
    %v1691 = vpop.permute.xlu0 %1690
    %v1694 = vsel %vm312, %v1114, %v1673
    %v1695 = vsel %vm312, %v1193, %v1675
    %v1696 = vsel %vm949, %v1694, %v1681
    %v1697 = vsel %vm949, %v1695, %v1683
    %vm1698 = vcmask 195584
    %v1699 = vsel %vm1698, %v1696, %v1689
    %v1700 = vsel %vm1698, %v1697, %v1691
    %v1701 = vlaneseq
    %v1702 = vshrl.u32 %v1701, 7
    %v1703 = vsub.s32 4, %v1702
    %v1704 = vrot.slane %v91, %v1703
    %1709 = vrot.lane.b32.xlu0 %v79, 32
    %v1710 = vpop.permute.xlu0 %1709
    %1711 = vrot.lane.b32.xlu0 %v81, 32
    %v1712 = vpop.permute.xlu0 %1711
    %1713 = vrot.lane.b32.xlu0 %v83, 32
    %v1714 = vpop.permute.xlu0 %1713
    %1715 = vrot.lane.b32.xlu0 %v85, 32
    %v1716 = vpop.permute.xlu0 %1715
    %v1722 = vsel %vm95, %v1699, 0
    %v1725 = vsel %vm95, %v1700, 0
    %1727 = vmatprep.subr.mxu0 0.0
    %1728 = vmatpush1.msra.mxu0 %v1710
    %1729 = vmatprep.subr.mxu0 0.0
    %1730 = vmatpush1.msra.mxu0 %v1712
    %1731 = vmatprep.subr.mxu0 0.0
    %1732 = vmatpush1.msra.mxu0 %v1714
    %1733 = vmatprep.subr.mxu0 0.0
    %1734 = vmatpush1.msra.mxu0 %v1716
    %1735 = vmatprep.subr.mxu0 0.0
    %1736 = vmatpush1.msra.mxu0 0.0
    %1737 = vmatprep.subr.mxu0 0.0
    %1738 = vmatpush1.msra.mxu0 0.0
    %1739 = vmatprep.subr.mxu0 0.0
    %1740 = vmatpush1.msra.mxu0 0.0
    %1741 = vmatprep.subr.mxu0 0.0
    %1742 = vmatpush1.msra.mxu0 0.0
    %1743 = vmatprep.subr.mxu0 0.0
    %1744 = vmatpush1.msra.mxu0 0.0
    %1745 = vmatprep.subr.mxu0 0.0
    %1746 = vmatpush1.msra.mxu0 0.0
    %1747 = vmatprep.subr.mxu0 0.0
    %1748 = vmatpush1.msra.mxu0 0.0
    %1749 = vmatprep.subr.mxu0 0.0
    %1750 = vmatpush1.msra.mxu0 0.0
    %1751 = vmatprep.subr.mxu0 0.0
    %1752 = vmatpush1.msra.mxu0 0.0
    %1753 = vmatprep.subr.mxu0 0.0
    %1754 = vmatpush1.msra.mxu0 0.0
    %1755 = vmatprep.subr.mxu0 0.0
    %1756 = vmatpush1.msra.mxu0 0.0
    %1757 = vmatprep.subr.mxu0 0.0
    %1758 = vmatpush1.msra.mxu0 0.0
    %1759 = vmatprep.subr.mxu0 0.0
    %1760 = vmatpush1.msra.mxu0 0.0
    %1761 = vmatprep.subr.mxu0 0.0
    %1762 = vmatpush1.msra.mxu0 0.0
    %1763 = vmatprep.subr.mxu0 0.0
    %1764 = vmatpush1.msra.mxu0 0.0
    %1765 = vmatprep.subr.mxu0 0.0
    %1766 = vmatpush1.msra.mxu0 0.0
    %1767 = vmatprep.subr.mxu0 0.0
    %1768 = vmatpush1.msra.mxu0 0.0
    %1769 = vmatprep.subr.mxu0 0.0
    %1770 = vmatpush1.msra.mxu0 0.0
    %1771 = vmatprep.subr.mxu0 0.0
    %1772 = vmatpush1.msra.mxu0 0.0
    %1773 = vmatprep.subr.mxu0 0.0
    %1774 = vmatpush1.msra.mxu0 0.0
    %1775 = vmatprep.subr.mxu0 0.0
    %1776 = vmatpush1.msra.mxu0 0.0
    %1777 = vmatprep.subr.mxu0 0.0
    %1778 = vmatpush1.msra.mxu0 0.0
    %1779 = vmatprep.subr.mxu0 0.0
    %1780 = vmatpush1.msra.mxu0 0.0
    %1781 = vmatprep.subr.mxu0 0.0
    %1782 = vmatpush1.msra.mxu0 0.0
    %1783 = vmatprep.subr.mxu0 0.0
    %1784 = vmatpush1.msra.mxu0 0.0
    %1785 = vmatprep.subr.mxu0 0.0
    %1786 = vmatpush1.msra.mxu0 0.0
    %1787 = vmatprep.subr.mxu0 0.0
    %1788 = vmatpush1.msra.mxu0 0.0
    %1789 = vmatprep.subr.mxu0 0.0
    %1790 = vmatpush1.msra.mxu0 0.0
    %1791 = vmatprep.mubr.f32.mxu0 0.0
    %1792 = vmatmul.mubr.f32.gmra.mrb[0].mxu0 %v1722
    %v1793 = vpop.f32.mrb[0].mxu0
    %v1794 = vadd.f32 %v1704, %v1793
    %v1795 = vpop.f32.mrb[0].mxu0
    %1796 = vmatprep.mubr.f32.mxu0 0.0
    %1797 = vmatmul.mubr.f32.gmra.mrb[0].mxu0 %v1725
    %v1798 = vpop.f32.mrb[0].mxu0
    %v1799 = vadd.f32 %v1704, %v1798
    %v1800 = vpop.f32.mrb[0].mxu0
    %1801 = vdwg.mxu0
    %v1802 = vadd.f32 %v133, %v1794
    %v1803 = vadd.f32 %v134, %v1799
    %v1804 = vsel %vm95, %v1802, 0.0
    %1805 = vadd.xlane.f32.xlu0 %v1804
    %v1806 = vpop.xlane.xlu0 %1805
    %v1807 = vsel %vm95, %v1803, 0.0
    %1808 = vadd.xlane.f32.xlu0 %v1807
    %v1809 = vpop.xlane.xlu0 %1808
    %v1810 = vmul.f32 %v1806, %v102
    %v1811 = vmul.f32 %v1809, %v102
    %v1812 = vsub.f32 %v1802, %v1810
    %v1813 = vsub.f32 %v1803, %v1811
    %v1814 = vmul.f32 %v1812, %v1812
    %v1815 = vmul.f32 %v1813, %v1813
    %v1816 = vsel %vm95, %v1814, 0.0
    %1817 = vadd.xlane.f32.xlu0 %v1816
    %v1818 = vpop.xlane.xlu0 %1817
    %v1819 = vsel %vm95, %v1815, 0.0
    %1820 = vadd.xlane.f32.xlu0 %v1819
    %v1821 = vpop.xlane.xlu0 %1820
    %v1822 = vmul.f32 %v1818, %v102
    %v1823 = vmul.f32 %v1821, %v102
    %v1824 = vadd.f32 %v1822, 1e-05
    %v1825 = vadd.f32 %v1823, 1e-05
    %v1826 = vrsqrt.pop %v1824
    %v1827 = vrsqrt.pop %v1825
    %v1828 = vmul.f32 %v1812, %v1826
    %v1829 = vmul.f32 %v1813, %v1827
    %v1830 = vlaneseq
    %v1831 = vshrl.u32 %v1830, 7
    %v1832 = vsub.s32 5, %v1831
    %v1833 = vrot.slane %v91, %v1832
    %v1834 = vmul.f32 %v1828, %v1833
    %v1835 = vmul.f32 %v1829, %v1833
    %v1836 = vlaneseq
    %v1837 = vshrl.u32 %v1836, 7
    %v1838 = vsub.s32 6, %v1837
    %v1839 = vrot.slane %v91, %v1838
    %v1840 = vadd.f32 %v1834, %v1839
    %v1841 = vadd.f32 %v1835, %v1839
    %v1842 = vlaneseq
    %v1843 = vshrl.u32 %v1842, 7
    %v1844 = vsub.s32 7, %v1843
    %v1845 = vrot.slane %v91, %v1844
    %v1847 = vsel %vm95, %v1840, 0
    %v1850 = vsel %vm95, %v1841, 0
    %1852 = vmatprep.subr.mxu0 0.0
    %1853 = vmatpush1.msra.mxu0 %v80
    %1854 = vmatprep.subr.mxu0 0.0
    %1855 = vmatpush1.msra.mxu0 %v82
    %1856 = vmatprep.subr.mxu0 0.0
    %1857 = vmatpush1.msra.mxu0 %v84
    %1858 = vmatprep.subr.mxu0 0.0
    %1859 = vmatpush1.msra.mxu0 %v86
    %1860 = vmatprep.subr.mxu0 0.0
    %1861 = vmatpush1.msra.mxu0 0.0
    %1862 = vmatprep.subr.mxu0 0.0
    %1863 = vmatpush1.msra.mxu0 0.0
    %1864 = vmatprep.subr.mxu0 0.0
    %1865 = vmatpush1.msra.mxu0 0.0
    %1866 = vmatprep.subr.mxu0 0.0
    %1867 = vmatpush1.msra.mxu0 0.0
    %1868 = vmatprep.subr.mxu0 0.0
    %1869 = vmatpush1.msra.mxu0 0.0
    %1870 = vmatprep.subr.mxu0 0.0
    %1871 = vmatpush1.msra.mxu0 0.0
    %1872 = vmatprep.subr.mxu0 0.0
    %1873 = vmatpush1.msra.mxu0 0.0
    %1874 = vmatprep.subr.mxu0 0.0
    %1875 = vmatpush1.msra.mxu0 0.0
    %1876 = vmatprep.subr.mxu0 0.0
    %1877 = vmatpush1.msra.mxu0 0.0
    %1878 = vmatprep.subr.mxu0 0.0
    %1879 = vmatpush1.msra.mxu0 0.0
    %1880 = vmatprep.subr.mxu0 0.0
    %1881 = vmatpush1.msra.mxu0 0.0
    %1882 = vmatprep.subr.mxu0 0.0
    %1883 = vmatpush1.msra.mxu0 0.0
    %1884 = vmatprep.subr.mxu0 0.0
    %1885 = vmatpush1.msra.mxu0 0.0
    %1886 = vmatprep.subr.mxu0 0.0
    %1887 = vmatpush1.msra.mxu0 0.0
    %1888 = vmatprep.subr.mxu0 0.0
    %1889 = vmatpush1.msra.mxu0 0.0
    %1890 = vmatprep.subr.mxu0 0.0
    %1891 = vmatpush1.msra.mxu0 0.0
    %1892 = vmatprep.subr.mxu0 0.0
    %1893 = vmatpush1.msra.mxu0 0.0
    %1894 = vmatprep.subr.mxu0 0.0
    %1895 = vmatpush1.msra.mxu0 0.0
    %1896 = vmatprep.subr.mxu0 0.0
    %1897 = vmatpush1.msra.mxu0 0.0
    %1898 = vmatprep.subr.mxu0 0.0
    %1899 = vmatpush1.msra.mxu0 0.0
    %1900 = vmatprep.subr.mxu0 0.0
    %1901 = vmatpush1.msra.mxu0 0.0
    %1902 = vmatprep.subr.mxu0 0.0
    %1903 = vmatpush1.msra.mxu0 0.0
    %1904 = vmatprep.subr.mxu0 0.0
    %1905 = vmatpush1.msra.mxu0 0.0
    %1906 = vmatprep.subr.mxu0 0.0
    %1907 = vmatpush1.msra.mxu0 0.0
    %1908 = vmatprep.subr.mxu0 0.0
    %1909 = vmatpush1.msra.mxu0 0.0
    %1910 = vmatprep.subr.mxu0 0.0
    %1911 = vmatpush1.msra.mxu0 0.0
    %1912 = vmatprep.subr.mxu0 0.0
    %1913 = vmatpush1.msra.mxu0 0.0
    %1914 = vmatprep.subr.mxu0 0.0
    %1915 = vmatpush1.msra.mxu0 0.0
    %1916 = vmatprep.mubr.f32.mxu0 0.0
    %1917 = vmatmul.mubr.f32.gmra.mrb[0].mxu0 %v1847
    %v1918 = vpop.f32.mrb[0].mxu0
    %v1919 = vadd.f32 %v1845, %v1918
    %v1920 = vpop.f32.mrb[0].mxu0
    %1921 = vmatprep.mubr.f32.mxu0 0.0
    %1922 = vmatmul.mubr.f32.gmra.mrb[0].mxu0 %v1850
    %v1923 = vpop.f32.mrb[0].mxu0
    %v1924 = vadd.f32 %v1845, %v1923
    %v1925 = vpop.f32.mrb[0].mxu0
    %1926 = vdwg.mxu0
    %v1927 = vmax.f32 %v1919, 0.0
    %v1928 = vmax.f32 %v1924, 0.0
    %v1929 = vlaneseq
    %v1930 = vshrl.u32 %v1929, 7
    %v1931 = vsub.s32 0, %v1930
    %v1932 = vrot.slane %v92, %v1931
    %1941 = vrot.lane.b32.xlu0 %v80, 64
    %v1942 = vpop.permute.xlu0 %1941
    %1943 = vrot.lane.b32.xlu0 %v82, 64
    %v1944 = vpop.permute.xlu0 %1943
    %1945 = vrot.lane.b32.xlu0 %v84, 64
    %v1946 = vpop.permute.xlu0 %1945
    %1947 = vrot.lane.b32.xlu0 %v86, 64
    %v1948 = vpop.permute.xlu0 %1947
    %1949 = vrot.lane.b32.xlu0 %v87, 64
    %v1950 = vpop.permute.xlu0 %1949
    %1951 = vrot.lane.b32.xlu0 %v88, 64
    %v1952 = vpop.permute.xlu0 %1951
    %1953 = vrot.lane.b32.xlu0 %v89, 64
    %v1954 = vpop.permute.xlu0 %1953
    %1955 = vrot.lane.b32.xlu0 %v90, 64
    %v1956 = vpop.permute.xlu0 %1955
    %vm1965 = vcmask 523264
    %v1967 = vsel %vm1965, %v1927, 0
    %v1970 = vsel %vm1965, %v1928, 0
    %1972 = vmatprep.subr.mxu0 0.0
    %1973 = vmatpush1.msra.mxu0 %v1942
    %1974 = vmatprep.subr.mxu0 0.0
    %1975 = vmatpush1.msra.mxu0 %v1944
    %1976 = vmatprep.subr.mxu0 0.0
    %1977 = vmatpush1.msra.mxu0 %v1946
    %1978 = vmatprep.subr.mxu0 0.0
    %1979 = vmatpush1.msra.mxu0 %v1948
    %1980 = vmatprep.subr.mxu0 0.0
    %1981 = vmatpush1.msra.mxu0 %v1950
    %1982 = vmatprep.subr.mxu0 0.0
    %1983 = vmatpush1.msra.mxu0 %v1952
    %1984 = vmatprep.subr.mxu0 0.0
    %1985 = vmatpush1.msra.mxu0 %v1954
    %1986 = vmatprep.subr.mxu0 0.0
    %1987 = vmatpush1.msra.mxu0 %v1956
    %1988 = vmatprep.subr.mxu0 0.0
    %1989 = vmatpush1.msra.mxu0 0.0
    %1990 = vmatprep.subr.mxu0 0.0
    %1991 = vmatpush1.msra.mxu0 0.0
    %1992 = vmatprep.subr.mxu0 0.0
    %1993 = vmatpush1.msra.mxu0 0.0
    %1994 = vmatprep.subr.mxu0 0.0
    %1995 = vmatpush1.msra.mxu0 0.0
    %1996 = vmatprep.subr.mxu0 0.0
    %1997 = vmatpush1.msra.mxu0 0.0
    %1998 = vmatprep.subr.mxu0 0.0
    %1999 = vmatpush1.msra.mxu0 0.0
    %2000 = vmatprep.subr.mxu0 0.0
    %2001 = vmatpush1.msra.mxu0 0.0
    %2002 = vmatprep.subr.mxu0 0.0
    %2003 = vmatpush1.msra.mxu0 0.0
    %2004 = vmatprep.subr.mxu0 0.0
    %2005 = vmatpush1.msra.mxu0 0.0
    %2006 = vmatprep.subr.mxu0 0.0
    %2007 = vmatpush1.msra.mxu0 0.0
    %2008 = vmatprep.subr.mxu0 0.0
    %2009 = vmatpush1.msra.mxu0 0.0
    %2010 = vmatprep.subr.mxu0 0.0
    %2011 = vmatpush1.msra.mxu0 0.0
    %2012 = vmatprep.subr.mxu0 0.0
    %2013 = vmatpush1.msra.mxu0 0.0
    %2014 = vmatprep.subr.mxu0 0.0
    %2015 = vmatpush1.msra.mxu0 0.0
    %2016 = vmatprep.subr.mxu0 0.0
    %2017 = vmatpush1.msra.mxu0 0.0
    %2018 = vmatprep.subr.mxu0 0.0
    %2019 = vmatpush1.msra.mxu0 0.0
    %2020 = vmatprep.subr.mxu0 0.0
    %2021 = vmatpush1.msra.mxu0 0.0
    %2022 = vmatprep.subr.mxu0 0.0
    %2023 = vmatpush1.msra.mxu0 0.0
    %2024 = vmatprep.subr.mxu0 0.0
    %2025 = vmatpush1.msra.mxu0 0.0
    %2026 = vmatprep.subr.mxu0 0.0
    %2027 = vmatpush1.msra.mxu0 0.0
    %2028 = vmatprep.subr.mxu0 0.0
    %2029 = vmatpush1.msra.mxu0 0.0
    %2030 = vmatprep.subr.mxu0 0.0
    %2031 = vmatpush1.msra.mxu0 0.0
    %2032 = vmatprep.subr.mxu0 0.0
    %2033 = vmatpush1.msra.mxu0 0.0
    %2034 = vmatprep.subr.mxu0 0.0
    %2035 = vmatpush1.msra.mxu0 0.0
    %2036 = vmatprep.mubr.f32.mxu0 0.0
    %2037 = vmatmul.mubr.f32.gmra.mrb[0].mxu0 %v1967
    %v2038 = vpop.f32.mrb[0].mxu0
    %v2039 = vadd.f32 %v1932, %v2038
    %v2040 = vpop.f32.mrb[0].mxu0
    %2041 = vmatprep.mubr.f32.mxu0 0.0
    %2042 = vmatmul.mubr.f32.gmra.mrb[0].mxu0 %v1970
    %v2043 = vpop.f32.mrb[0].mxu0
    %v2044 = vadd.f32 %v1932, %v2043
    %v2045 = vpop.f32.mrb[0].mxu0
    %2046 = vdwg.mxu0
    %v2047 = vadd.f32 %v1840, %v2039
    %v2048 = vadd.f32 %v1841, %v2044
    %v2049 = vsel %vm95, %v2047, 0.0
    %2050 = vadd.xlane.f32.xlu0 %v2049
    %v2051 = vpop.xlane.xlu0 %2050
    %v2052 = vsel %vm95, %v2048, 0.0
    %2053 = vadd.xlane.f32.xlu0 %v2052
    %v2054 = vpop.xlane.xlu0 %2053
    %v2055 = vmul.f32 %v2051, %v102
    %v2056 = vmul.f32 %v2054, %v102
    %v2057 = vsub.f32 %v2047, %v2055
    %v2058 = vsub.f32 %v2048, %v2056
    %v2059 = vmul.f32 %v2057, %v2057
    %v2060 = vmul.f32 %v2058, %v2058
    %v2061 = vsel %vm95, %v2059, 0.0
    %2062 = vadd.xlane.f32.xlu0 %v2061
    %v2063 = vpop.xlane.xlu0 %2062
    %v2064 = vsel %vm95, %v2060, 0.0
    %2065 = vadd.xlane.f32.xlu0 %v2064
    %v2066 = vpop.xlane.xlu0 %2065
    %v2067 = vmul.f32 %v2063, %v102
    %v2068 = vmul.f32 %v2066, %v102
    %v2069 = vadd.f32 %v2067, 1e-05
    %v2070 = vadd.f32 %v2068, 1e-05
    %v2071 = vrsqrt.pop %v2069
    %v2072 = vrsqrt.pop %v2070
    %v2073 = vmul.f32 %v2057, %v2071
    %v2074 = vmul.f32 %v2058, %v2072
    %v2075 = vlaneseq
    %v2076 = vshrl.u32 %v2075, 7
    %v2077 = vsub.s32 1, %v2076
    %v2078 = vrot.slane %v92, %v2077
    %v2079 = vmul.f32 %v2073, %v2078
    %v2080 = vmul.f32 %v2074, %v2078
    %v2081 = vlaneseq
    %v2082 = vshrl.u32 %v2081, 7
    %v2083 = vsub.s32 2, %v2082
    %v2084 = vrot.slane %v92, %v2083
    %v2085 = vadd.f32 %v2079, %v2084
    %v2086 = vadd.f32 %v2080, %v2084
    %2087 = vst.msk [vmem:[#allocation10] sm:$0xff] %vm95, %v2085
    %2088 = vst.msk [vmem:[#allocation10 + $0x8] sm:$0xff] %vm95, %v2086
    // Predicated region
    $region34: #{tpu_custom_call.1} parent=1 // pred_check
      _
    $region35: #{tpu_custom_call.1} parent=1 // pred_check_branch
      %2090 = sbr.rel (0) target = $region37
    $region36: #{tpu_custom_call.1} parent=1 // pred_region
      %s2092 = ssub.s32 256, 256
      %2093 = vsyncadd [#allocation4], %s2092
      %s2094 = sshll.u32 [#allocation10], 4
      %s2095 = int_to_ptr.vmem [resolvable:$true] %s2094
      %2100 = dma.vmem_to_hbm [thread:$0]  %s2095, 256, %s4, [#allocation4], 128, 128, 8
    $region37: #{tpu_custom_call.1} parent=1 // pred_fallthru
      _
    // Predicated region
    $region38: #{tpu_custom_call.1} parent=1 // pred_check
      _
    $region39: #{tpu_custom_call.1} parent=1 // pred_check_branch
      %2102 = sbr.rel (0) target = $region41
    $region40: #{tpu_custom_call.1} parent=1 // pred_region
      %2103 = dma.done [#allocation4], 256
    $region41: #{tpu_custom_call.1} parent=1 // pred_fallthru
      _
    %2104 = vsyncpa [#allocation3], 1
    %2105 = vsyncpa [#allocation6], 1
    %2106 = vsyncpa [#allocation9], 1
    %2107 = vsyncpa [#allocation4], 1

</llo_original>
